<compile_context>
chip_gen: v6e
topology: v6e:2x2x1
jax: 0.10.0
libtpu: 0.0.40
codegen_flags: <defaults>
</compile_context>

<pallas_src>
import jax
import jax.numpy as jnp
import numpy as np
from jax.experimental import pallas as pl
from jax.experimental.pallas import tpu as pltpu

BN_EPS = 1e-5
LANE = 128


def _round_up(x, m=LANE):
    return ((x + m - 1) // m) * m


# ------------------------------ fused kernel ------------------------------

def _bn_train(y, gamma, beta):
    """BatchNorm1d forward, training mode (batch stats, biased var, eps=1e-5).

    Two-pass statistics (mean, then centered second moment) to avoid
    E[y^2]-mean^2 cancellation.  Both axis-0 sums are tiny ones(1,n) @ .
    MXU matmuls instead of XLU cross-sublane reduces: the MXU is idle at these
    shapes and the XLU (2 units on v6e/v7x) is the slot most likely to
    saturate once the batch grows.
    """
    n = y.shape[0]
    inv_n = 1.0 / n                                  # static python float
    ones_row = jnp.ones((1, n), jnp.float32)
    mean = jnp.dot(ones_row, y, preferred_element_type=jnp.float32) * inv_n   # (1, D)
    yc = y - mean
    var = jnp.dot(ones_row, yc * yc, preferred_element_type=jnp.float32) * inv_n
    return yc * jax.lax.rsqrt(var + BN_EPS) * gamma + beta


def _fast_reciprocal(d):
    """EUP vrcp seed (approx, ~2^-12 rel err) + one VPU Newton step.

    Keeps the exact-divide chain off the VALU while preserving ~1e-7 accuracy
    so the 1e-4 reference check is unaffected.
    """
    r = pl.reciprocal(d, approx=True)
    return r * (2.0 - d * r)


def fused_jamie_kernel(x0_ref, x1_ref, corr_ref,
                       ew0_ref, eb0_ref, eg0_ref, ez0_ref,
                       ew1_ref, eb1_ref, eg1_ref, ez1_ref,
                       dw0_ref, db0_ref, dg0_ref, dz0_ref,
                       dw1_ref, db1_ref, dg1_ref, dz1_ref,
                       e0_ref, e1_ref, r0_ref, r1_ref):
    f32 = jnp.float32

    # ---- encoders: embedded_i = BN(x_i @ W_i + b_i)  (K dims UNpadded) ----
    e0 = _bn_train(
        jnp.dot(x0_ref[...], ew0_ref[...], preferred_element_type=f32) + eb0_ref[...],
        eg0_ref[...], ez0_ref[...])
    e1 = _bn_train(
        jnp.dot(x1_ref[...], ew1_ref[...], preferred_element_type=f32) + eb1_ref[...],
        eg1_ref[...], ez1_ref[...])
    e0_ref[...] = e0
    e1_ref[...] = e1

    corr = corr_ref[...]
    n0, n1 = corr.shape
    Dp = e0.shape[1]

    # Contract corr axis 0 == implicit corr.T.  Note: Mosaic inserts an XLU
    # vxpose of corr before the MXU push for these; at current sizes corr is a
    # single vreg so it is free.  For large n0,n1 materialize corr.T once in
    # the wrapper instead (it grows as n0*n1 while everything else is linear).
    contract0 = (((0,), (0,)), ((), ()))

    # Lane-replicated denominators straight off the MXU: the (n, Dp) ones RHS
    # makes row/col sums come out already broadcast over the Dp lanes -- no
    # (n,1)->(n,Dp) XLU cross-lane broadcast, no masked single-lane vregs.
    ones_rows = jnp.ones((n1, Dp), f32)
    ones_cols = jnp.ones((n0, Dp), f32)
    row_sum = jnp.dot(corr, ones_rows, preferred_element_type=f32)             # (n0, Dp)
    col_sum = jax.lax.dot_general(corr, ones_cols, contract0,
                                  preferred_element_type=f32)                  # (n1, Dp)
    inv_d0 = _fast_reciprocal(1.0 + row_sum)
    inv_d1 = _fast_reciprocal(1.0 + col_sum)

    # ---- cross-modal combination ----
    cross0 = jnp.dot(corr, e1, preferred_element_type=f32)                     # corr   @ e1
    cross1 = jax.lax.dot_general(corr, e0, contract0,
                                 preferred_element_type=f32)                   # corr.T @ e0
    comb0 = (e0 + cross0) * inv_d0
    comb1 = (e1 + cross1) * inv_d1

    # ---- decoders: reconstructed_i = BN(comb_i @ V_i + c_i) ----
    r0_ref[...] = _bn_train(
        jnp.dot(comb0, dw0_ref[...], preferred_element_type=f32) + db0_ref[...],
        dg0_ref[...], dz0_ref[...])
    r1_ref[...] = _bn_train(
        jnp.dot(comb1, dw1_ref[...], preferred_element_type=f32) + db1_ref[...],
        dg1_ref[...], dz1_ref[...])


# ------------------------------ wrapper ------------------------------

def _pad2(a, rows, cols, value=0.0):
    return jnp.pad(a, ((0, rows - a.shape[0]), (0, cols - a.shape[1])),
                   constant_values=value)


def pad_params(params, input_dim, output_dim):
    """Pad only OUTPUT/lane dims to 128 (lane-dense stores); K dims stay logical.

    Padded weight cols / rows, biases and betas are zero (gamma pad value is
    irrelevant), so padded activation columns are exactly zero everywhere and
    never perturb the real sub-block.  Done ONCE up front; order matches the
    kernel args.
    """
    Dp = _round_up(output_dim)
    flat = []
    for i in range(2):
        flat += [
            _pad2(params["enc_w"][i], input_dim[i], Dp),        # (din, Dp): K unpadded
            _pad2(params["enc_b"][i], 1, Dp),
            _pad2(params["enc_g"][i], 1, Dp, value=1.0),
            _pad2(params["enc_beta"][i], 1, Dp),
        ]
    for i in range(2):
        Rp = _round_up(input_dim[i])
        flat += [
            _pad2(params["dec_w"][i], Dp, Rp),                  # (Dp, Rp): lane-dense out
            _pad2(params["dec_b"][i], 1, Rp),
            _pad2(params["dec_g"][i], 1, Rp, value=1.0),
            _pad2(params["dec_beta"][i], 1, Rp),
        ]
    return flat


def make_forward(input_dim, output_dim):
    """Returns a jitted forward: ((e0, e1), (r0, r1)) with LANE-PADDED columns.

    Logical values are the leading output_dim / input_dim[i] columns (the rest
    are exact zeros); slice on the host if the caller needs the logical view.
    Keeping padded layouts end-to-end removes 4 per-call device slice ops.
    """
    Dp = _round_up(output_dim)
    Rp = tuple(_round_up(d) for d in input_dim)

    def vmem():
        return pl.BlockSpec(memory_space=pltpu.MemorySpace.VMEM)

    n_inputs = 3 + 16  # x0, x1, corr + 16 padded params

    @jax.jit
    def forward(padded_flat_params, X, corr):
        n0, n1 = X[0].shape[0], X[1].shape[0]
        out_shape = (
            jax.ShapeDtypeStruct((n0, Dp), jnp.float32),     # embedded 0 (lane-padded)
            jax.ShapeDtypeStruct((n1, Dp), jnp.float32),     # embedded 1 (lane-padded)
            jax.ShapeDtypeStruct((n0, Rp[0]), jnp.float32),  # reconstructed 0 (lane-padded)
            jax.ShapeDtypeStruct((n1, Rp[1]), jnp.float32),  # reconstructed 1 (lane-padded)
        )
        e0p, e1p, r0p, r1p = pl.pallas_call(
            fused_jamie_kernel,
            out_shape=out_shape,
            in_specs=[vmem() for _ in range(n_inputs)],
            out_specs=tuple(vmem() for _ in range(4)),
            # Explicit scoped-VMEM budget: above v5e's 16 MiB default, within
            # v7x's 64 MiB physical.  All operands stay resident in VMEM.
            compiler_params=pltpu.CompilerParams(vmem_limit_bytes=32 * 1024 * 1024),
        )(X[0], X[1], corr, *padded_flat_params)
        return (e0p, e1p), (r0p, r1p)

    return forward


# ------------------------- pure-JAX reference check -------------------------

def ref_forward(params, X, corr):
    def bn(y, g, b):
        m = jnp.mean(y, 0, keepdims=True)
        v = jnp.mean((y - m) ** 2, 0, keepdims=True)
        return (y - m) / jnp.sqrt(v + BN_EPS) * g + b

    emb = [bn(X[i] @ params["enc_w"][i] + params["enc_b"][i],
              params["enc_g"][i], params["enc_beta"][i]) for i in range(2)]
    corrs = [corr, corr.T]
    rec = []
    for i in range(2):
        denom = 1.0 + corrs[i].sum(1, keepdims=True)
        comb = (emb[i] + corrs[i] @ emb[(i + 1) % 2]) / denom
        rec.append(bn(comb @ params["dec_w"][i] + params["dec_b"][i],
                      params["dec_g"][i], params["dec_beta"][i]))
    return emb, rec


# ----------------------------------- main -----------------------------------

def init_params(key, input_dim, output_dim):
    """Deterministic synthetic parameters, PyTorch-Linear-style uniform init.

    nn.Linear weights (out, in) are stored pre-transposed as (in, out); biases
    and BN gamma/beta as (1, features) for lane-wise broadcast in the kernel.
    """
    params = {"enc_w": [], "enc_b": [], "enc_g": [], "enc_beta": [],
              "dec_w": [], "dec_b": [], "dec_g": [], "dec_beta": []}
    keys = jax.random.split(key, 4 * len(input_dim))
    k = 0
    for i in range(len(input_dim)):
        din, dout = input_dim[i], output_dim
        bound = 1.0 / np.sqrt(din)
        params["enc_w"].append(jax.random.uniform(
            keys[k], (din, dout), jnp.float32, -bound, bound)); k += 1
        params["enc_b"].append(jax.random.uniform(
            keys[k], (1, dout), jnp.float32, -bound, bound)); k += 1
        params["enc_g"].append(jnp.ones((1, dout), jnp.float32))
        params["enc_beta"].append(jnp.zeros((1, dout), jnp.float32))

        bound = 1.0 / np.sqrt(dout)
        params["dec_w"].append(jax.random.uniform(
            keys[k], (dout, din), jnp.float32, -bound, bound)); k += 1
        params["dec_b"].append(jax.random.uniform(
            keys[k], (1, din), jnp.float32, -bound, bound)); k += 1
        params["dec_g"].append(jnp.ones((1, din), jnp.float32))
        params["dec_beta"].append(jnp.zeros((1, din), jnp.float32))
    return params


if __name__ == "__main__":
    input_dim = (16, 12)   # two modalities with different feature dims
    output_dim = 32        # shared latent dim
    n0, n1 = 8, 16         # batch sizes per modality

    root = jax.random.PRNGKey(0)
    k_params, k_x0, k_x1, k_corr = jax.random.split(root, 4)

    params = init_params(k_params, input_dim, output_dim)
    X0 = jax.random.normal(k_x0, (n0, input_dim[0]), jnp.float32)
    X1 = jax.random.normal(k_x1, (n1, input_dim[1]), jnp.float32)
    corr = jax.random.uniform(k_corr, (n0, n1), jnp.float32)  # non-negative

    padded_params = pad_params(params, input_dim, output_dim)   # once, up front
    forward = make_forward(input_dim, output_dim)

    (e0p, e1p), (r0p, r1p) = forward(padded_params, (X0, X1), corr)
    jax.block_until_ready((e0p, e1p, r0p, r1p))

    # Reference comparison: slice the lane-padded kernel outputs back to the
    # logical widths on the HOST (no device slice ops in the hot path).
    emb_ref, rec_ref = ref_forward(params, (X0, X1), corr)
    pairs = [
        (np.asarray(e0p)[:, :output_dim], emb_ref[0]),
        (np.asarray(e1p)[:, :output_dim], emb_ref[1]),
        (np.asarray(r0p)[:, :input_dim[0]], rec_ref[0]),
        (np.asarray(r1p)[:, :input_dim[1]], rec_ref[1]),
    ]
    for got, want in pairs:
        np.testing.assert_allclose(got, np.asarray(want), rtol=1e-4, atol=1e-4)

    print("KERNEL_OK")
</pallas_src>

<mosaic_0001>
module attributes {stable_mosaic.version = 11 : i64} {
  func.func @fused_jamie_kernel(%arg0: memref<8x16xf32, #tpu.memory_space<vmem>>, %arg1: memref<16x12xf32, #tpu.memory_space<vmem>>, %arg2: memref<8x16xf32, #tpu.memory_space<vmem>>, %arg3: memref<16x128xf32, #tpu.memory_space<vmem>>, %arg4: memref<1x128xf32, #tpu.memory_space<vmem>>, %arg5: memref<1x128xf32, #tpu.memory_space<vmem>>, %arg6: memref<1x128xf32, #tpu.memory_space<vmem>>, %arg7: memref<12x128xf32, #tpu.memory_space<vmem>>, %arg8: memref<1x128xf32, #tpu.memory_space<vmem>>, %arg9: memref<1x128xf32, #tpu.memory_space<vmem>>, %arg10: memref<1x128xf32, #tpu.memory_space<vmem>>, %arg11: memref<128x128xf32, #tpu.memory_space<vmem>>, %arg12: memref<1x128xf32, #tpu.memory_space<vmem>>, %arg13: memref<1x128xf32, #tpu.memory_space<vmem>>, %arg14: memref<1x128xf32, #tpu.memory_space<vmem>>, %arg15: memref<128x128xf32, #tpu.memory_space<vmem>>, %arg16: memref<1x128xf32, #tpu.memory_space<vmem>>, %arg17: memref<1x128xf32, #tpu.memory_space<vmem>>, %arg18: memref<1x128xf32, #tpu.memory_space<vmem>>, %arg19: memref<8x128xf32, #tpu.memory_space<vmem>>, %arg20: memref<16x128xf32, #tpu.memory_space<vmem>>, %arg21: memref<8x128xf32, #tpu.memory_space<vmem>>, %arg22: memref<16x128xf32, #tpu.memory_space<vmem>>) attributes {dimension_semantics = [], scalar_prefetch = 0 : i64, scratch_operands = 0 : i64, tpu.core_type = #tpu.core_type<tc>} {
    %c0 = arith.constant 0 : index
    %c0_0 = arith.constant 0 : index
    %0 = vector.load %arg0[%c0, %c0_0] : memref<8x16xf32, #tpu.memory_space<vmem>>, vector<8x16xf32>
    %c0_1 = arith.constant 0 : index
    %c0_2 = arith.constant 0 : index
    %1 = vector.load %arg3[%c0_1, %c0_2] : memref<16x128xf32, #tpu.memory_space<vmem>>, vector<16x128xf32>
    %cst = arith.constant dense<0.000000e+00> : vector<8x128xf32>
    %2 = tpu.matmul %0, %1, %cst {dimension_numbers = #tpu.dot_dimension_numbers<[1], [0], [0], [1], [0, 0, 1, 1], [], []>} : vector<8x16xf32>, vector<16x128xf32>, vector<8x128xf32> -> vector<8x128xf32>
    %c0_3 = arith.constant 0 : index
    %c0_4 = arith.constant 0 : index
    %3 = vector.load %arg4[%c0_3, %c0_4] : memref<1x128xf32, #tpu.memory_space<vmem>>, vector<1x128xf32>
    %4 = vector.broadcast %3 : vector<1x128xf32> to vector<8x128xf32>
    %5 = arith.addf %2, %4 : vector<8x128xf32>
    %c0_5 = arith.constant 0 : index
    %c0_6 = arith.constant 0 : index
    %6 = vector.load %arg5[%c0_5, %c0_6] : memref<1x128xf32, #tpu.memory_space<vmem>>, vector<1x128xf32>
    %c0_7 = arith.constant 0 : index
    %c0_8 = arith.constant 0 : index
    %7 = vector.load %arg6[%c0_7, %c0_8] : memref<1x128xf32, #tpu.memory_space<vmem>>, vector<1x128xf32>
    %cst_9 = arith.constant 1.000000e+00 : f32
    %8 = vector.broadcast %cst_9 : f32 to vector<1x8xf32>
    %cst_10 = arith.constant dense<0.000000e+00> : vector<1x128xf32>
    %9 = tpu.matmul %8, %5, %cst_10 {dimension_numbers = #tpu.dot_dimension_numbers<[1], [0], [0], [1], [0, 0, 1, 1], [], []>} : vector<1x8xf32>, vector<8x128xf32>, vector<1x128xf32> -> vector<1x128xf32>
    %cst_11 = arith.constant 1.250000e-01 : f32
    %10 = vector.broadcast %cst_11 : f32 to vector<1x128xf32>
    %11 = arith.mulf %9, %10 : vector<1x128xf32>
    %12 = vector.broadcast %11 : vector<1x128xf32> to vector<8x128xf32>
    %13 = arith.subf %5, %12 : vector<8x128xf32>
    %14 = arith.mulf %13, %13 : vector<8x128xf32>
    %cst_12 = arith.constant dense<0.000000e+00> : vector<1x128xf32>
    %15 = tpu.matmul %8, %14, %cst_12 {dimension_numbers = #tpu.dot_dimension_numbers<[1], [0], [0], [1], [0, 0, 1, 1], [], []>} : vector<1x8xf32>, vector<8x128xf32>, vector<1x128xf32> -> vector<1x128xf32>
    %cst_13 = arith.constant 1.250000e-01 : f32
    %16 = vector.broadcast %cst_13 : f32 to vector<1x128xf32>
    %17 = arith.mulf %15, %16 : vector<1x128xf32>
    %cst_14 = arith.constant 9.99999974E-6 : f32
    %18 = vector.broadcast %cst_14 : f32 to vector<1x128xf32>
    %19 = arith.addf %17, %18 : vector<1x128xf32>
    %20 = math.rsqrt %19 : vector<1x128xf32>
    %21 = vector.broadcast %20 : vector<1x128xf32> to vector<8x128xf32>
    %22 = arith.mulf %13, %21 : vector<8x128xf32>
    %23 = vector.broadcast %6 : vector<1x128xf32> to vector<8x128xf32>
    %24 = arith.mulf %22, %23 : vector<8x128xf32>
    %25 = vector.broadcast %7 : vector<1x128xf32> to vector<8x128xf32>
    %26 = arith.addf %24, %25 : vector<8x128xf32>
    %c0_15 = arith.constant 0 : index
    %c0_16 = arith.constant 0 : index
    %27 = vector.load %arg1[%c0_15, %c0_16] : memref<16x12xf32, #tpu.memory_space<vmem>>, vector<16x12xf32>
    %c0_17 = arith.constant 0 : index
    %c0_18 = arith.constant 0 : index
    %28 = vector.load %arg7[%c0_17, %c0_18] : memref<12x128xf32, #tpu.memory_space<vmem>>, vector<12x128xf32>
    %cst_19 = arith.constant dense<0.000000e+00> : vector<16x128xf32>
    %29 = tpu.matmul %27, %28, %cst_19 {dimension_numbers = #tpu.dot_dimension_numbers<[1], [0], [0], [1], [0, 0, 1, 1], [], []>} : vector<16x12xf32>, vector<12x128xf32>, vector<16x128xf32> -> vector<16x128xf32>
    %c0_20 = arith.constant 0 : index
    %c0_21 = arith.constant 0 : index
    %30 = vector.load %arg8[%c0_20, %c0_21] : memref<1x128xf32, #tpu.memory_space<vmem>>, vector<1x128xf32>
    %31 = vector.broadcast %30 : vector<1x128xf32> to vector<16x128xf32>
    %32 = arith.addf %29, %31 : vector<16x128xf32>
    %c0_22 = arith.constant 0 : index
    %c0_23 = arith.constant 0 : index
    %33 = vector.load %arg9[%c0_22, %c0_23] : memref<1x128xf32, #tpu.memory_space<vmem>>, vector<1x128xf32>
    %c0_24 = arith.constant 0 : index
    %c0_25 = arith.constant 0 : index
    %34 = vector.load %arg10[%c0_24, %c0_25] : memref<1x128xf32, #tpu.memory_space<vmem>>, vector<1x128xf32>
    %cst_26 = arith.constant 1.000000e+00 : f32
    %35 = vector.broadcast %cst_26 : f32 to vector<1x16xf32>
    %cst_27 = arith.constant dense<0.000000e+00> : vector<1x128xf32>
    %36 = tpu.matmul %35, %32, %cst_27 {dimension_numbers = #tpu.dot_dimension_numbers<[1], [0], [0], [1], [0, 0, 1, 1], [], []>} : vector<1x16xf32>, vector<16x128xf32>, vector<1x128xf32> -> vector<1x128xf32>
    %cst_28 = arith.constant 6.250000e-02 : f32
    %37 = vector.broadcast %cst_28 : f32 to vector<1x128xf32>
    %38 = arith.mulf %36, %37 : vector<1x128xf32>
    %39 = vector.broadcast %38 : vector<1x128xf32> to vector<16x128xf32>
    %40 = arith.subf %32, %39 : vector<16x128xf32>
    %41 = arith.mulf %40, %40 : vector<16x128xf32>
    %cst_29 = arith.constant dense<0.000000e+00> : vector<1x128xf32>
    %42 = tpu.matmul %35, %41, %cst_29 {dimension_numbers = #tpu.dot_dimension_numbers<[1], [0], [0], [1], [0, 0, 1, 1], [], []>} : vector<1x16xf32>, vector<16x128xf32>, vector<1x128xf32> -> vector<1x128xf32>
    %cst_30 = arith.constant 6.250000e-02 : f32
    %43 = vector.broadcast %cst_30 : f32 to vector<1x128xf32>
    %44 = arith.mulf %42, %43 : vector<1x128xf32>
    %cst_31 = arith.constant 9.99999974E-6 : f32
    %45 = vector.broadcast %cst_31 : f32 to vector<1x128xf32>
    %46 = arith.addf %44, %45 : vector<1x128xf32>
    %47 = math.rsqrt %46 : vector<1x128xf32>
    %48 = vector.broadcast %47 : vector<1x128xf32> to vector<16x128xf32>
    %49 = arith.mulf %40, %48 : vector<16x128xf32>
    %50 = vector.broadcast %33 : vector<1x128xf32> to vector<16x128xf32>
    %51 = arith.mulf %49, %50 : vector<16x128xf32>
    %52 = vector.broadcast %34 : vector<1x128xf32> to vector<16x128xf32>
    %53 = arith.addf %51, %52 : vector<16x128xf32>
    %c0_32 = arith.constant 0 : index
    %c0_33 = arith.constant 0 : index
    %54 = vector.load %arg19[%c0_32, %c0_33] : memref<8x128xf32, #tpu.memory_space<vmem>>, vector<8x128xf32>
    tpu.vector_store %arg19[%c0_32, %c0_33], %26 {strides = array<i32>} : memref<8x128xf32, #tpu.memory_space<vmem>>, vector<8x128xf32>,
    %c0_34 = arith.constant 0 : index
    %c0_35 = arith.constant 0 : index
    %55 = vector.load %arg20[%c0_34, %c0_35] : memref<16x128xf32, #tpu.memory_space<vmem>>, vector<16x128xf32>
    tpu.vector_store %arg20[%c0_34, %c0_35], %53 {strides = array<i32>} : memref<16x128xf32, #tpu.memory_space<vmem>>, vector<16x128xf32>,
    %c0_36 = arith.constant 0 : index
    %c0_37 = arith.constant 0 : index
    %56 = vector.load %arg2[%c0_36, %c0_37] : memref<8x16xf32, #tpu.memory_space<vmem>>, vector<8x16xf32>
    %cst_38 = arith.constant 1.000000e+00 : f32
    %57 = vector.broadcast %cst_38 : f32 to vector<16x128xf32>
    %cst_39 = arith.constant 1.000000e+00 : f32
    %58 = vector.broadcast %cst_39 : f32 to vector<8x128xf32>
    %cst_40 = arith.constant dense<0.000000e+00> : vector<8x128xf32>
    %59 = tpu.matmul %56, %57, %cst_40 {dimension_numbers = #tpu.dot_dimension_numbers<[1], [0], [0], [1], [0, 0, 1, 1], [], []>} : vector<8x16xf32>, vector<16x128xf32>, vector<8x128xf32> -> vector<8x128xf32>
    %cst_41 = arith.constant dense<0.000000e+00> : vector<16x128xf32>
    %60 = tpu.matmul %56, %58, %cst_41 {dimension_numbers = #tpu.dot_dimension_numbers<[0], [0], [1], [1], [0, 1, 1, 1], [], []>} : vector<8x16xf32>, vector<8x128xf32>, vector<16x128xf32> -> vector<16x128xf32>
    %cst_42 = arith.constant 1.000000e+00 : f32
    %61 = vector.broadcast %cst_42 : f32 to vector<8x128xf32>
    %62 = arith.addf %61, %59 : vector<8x128xf32>
    %63 = tpu.reciprocal %62 {approx = true} : vector<8x128xf32> -> vector<8x128xf32>
    %64 = arith.mulf %62, %63 : vector<8x128xf32>
    %cst_43 = arith.constant 2.000000e+00 : f32
    %65 = vector.broadcast %cst_43 : f32 to vector<8x128xf32>
    %66 = arith.subf %65, %64 : vector<8x128xf32>
    %67 = arith.mulf %63, %66 : vector<8x128xf32>
    %cst_44 = arith.constant 1.000000e+00 : f32
    %68 = vector.broadcast %cst_44 : f32 to vector<16x128xf32>
    %69 = arith.addf %68, %60 : vector<16x128xf32>
    %70 = tpu.reciprocal %69 {approx = true} : vector<16x128xf32> -> vector<16x128xf32>
    %71 = arith.mulf %69, %70 : vector<16x128xf32>
    %cst_45 = arith.constant 2.000000e+00 : f32
    %72 = vector.broadcast %cst_45 : f32 to vector<16x128xf32>
    %73 = arith.subf %72, %71 : vector<16x128xf32>
    %74 = arith.mulf %70, %73 : vector<16x128xf32>
    %cst_46 = arith.constant dense<0.000000e+00> : vector<8x128xf32>
    %75 = tpu.matmul %56, %53, %cst_46 {dimension_numbers = #tpu.dot_dimension_numbers<[1], [0], [0], [1], [0, 0, 1, 1], [], []>} : vector<8x16xf32>, vector<16x128xf32>, vector<8x128xf32> -> vector<8x128xf32>
    %cst_47 = arith.constant dense<0.000000e+00> : vector<16x128xf32>
    %76 = tpu.matmul %56, %26, %cst_47 {dimension_numbers = #tpu.dot_dimension_numbers<[0], [0], [1], [1], [0, 1, 1, 1], [], []>} : vector<8x16xf32>, vector<8x128xf32>, vector<16x128xf32> -> vector<16x128xf32>
    %77 = arith.addf %26, %75 : vector<8x128xf32>
    %78 = arith.mulf %77, %67 : vector<8x128xf32>
    %79 = arith.addf %53, %76 : vector<16x128xf32>
    %80 = arith.mulf %79, %74 : vector<16x128xf32>
    %c0_48 = arith.constant 0 : index
    %c0_49 = arith.constant 0 : index
    %81 = vector.load %arg11[%c0_48, %c0_49] : memref<128x128xf32, #tpu.memory_space<vmem>>, vector<128x128xf32>
    %cst_50 = arith.constant dense<0.000000e+00> : vector<8x128xf32>
    %82 = tpu.matmul %78, %81, %cst_50 {dimension_numbers = #tpu.dot_dimension_numbers<[1], [0], [0], [1], [0, 0, 1, 1], [], []>} : vector<8x128xf32>, vector<128x128xf32>, vector<8x128xf32> -> vector<8x128xf32>
    %c0_51 = arith.constant 0 : index
    %c0_52 = arith.constant 0 : index
    %83 = vector.load %arg12[%c0_51, %c0_52] : memref<1x128xf32, #tpu.memory_space<vmem>>, vector<1x128xf32>
    %84 = vector.broadcast %83 : vector<1x128xf32> to vector<8x128xf32>
    %85 = arith.addf %82, %84 : vector<8x128xf32>
    %c0_53 = arith.constant 0 : index
    %c0_54 = arith.constant 0 : index
    %86 = vector.load %arg13[%c0_53, %c0_54] : memref<1x128xf32, #tpu.memory_space<vmem>>, vector<1x128xf32>
    %c0_55 = arith.constant 0 : index
    %c0_56 = arith.constant 0 : index
    %87 = vector.load %arg14[%c0_55, %c0_56] : memref<1x128xf32, #tpu.memory_space<vmem>>, vector<1x128xf32>
    %cst_57 = arith.constant 1.000000e+00 : f32
    %88 = vector.broadcast %cst_57 : f32 to vector<1x8xf32>
    %cst_58 = arith.constant dense<0.000000e+00> : vector<1x128xf32>
    %89 = tpu.matmul %88, %85, %cst_58 {dimension_numbers = #tpu.dot_dimension_numbers<[1], [0], [0], [1], [0, 0, 1, 1], [], []>} : vector<1x8xf32>, vector<8x128xf32>, vector<1x128xf32> -> vector<1x128xf32>
    %cst_59 = arith.constant 1.250000e-01 : f32
    %90 = vector.broadcast %cst_59 : f32 to vector<1x128xf32>
    %91 = arith.mulf %89, %90 : vector<1x128xf32>
    %92 = vector.broadcast %91 : vector<1x128xf32> to vector<8x128xf32>
    %93 = arith.subf %85, %92 : vector<8x128xf32>
    %94 = arith.mulf %93, %93 : vector<8x128xf32>
    %cst_60 = arith.constant dense<0.000000e+00> : vector<1x128xf32>
    %95 = tpu.matmul %88, %94, %cst_60 {dimension_numbers = #tpu.dot_dimension_numbers<[1], [0], [0], [1], [0, 0, 1, 1], [], []>} : vector<1x8xf32>, vector<8x128xf32>, vector<1x128xf32> -> vector<1x128xf32>
    %cst_61 = arith.constant 1.250000e-01 : f32
    %96 = vector.broadcast %cst_61 : f32 to vector<1x128xf32>
    %97 = arith.mulf %95, %96 : vector<1x128xf32>
    %cst_62 = arith.constant 9.99999974E-6 : f32
    %98 = vector.broadcast %cst_62 : f32 to vector<1x128xf32>
    %99 = arith.addf %97, %98 : vector<1x128xf32>
    %100 = math.rsqrt %99 : vector<1x128xf32>
    %101 = vector.broadcast %100 : vector<1x128xf32> to vector<8x128xf32>
    %102 = arith.mulf %93, %101 : vector<8x128xf32>
    %103 = vector.broadcast %86 : vector<1x128xf32> to vector<8x128xf32>
    %104 = arith.mulf %102, %103 : vector<8x128xf32>
    %105 = vector.broadcast %87 : vector<1x128xf32> to vector<8x128xf32>
    %106 = arith.addf %104, %105 : vector<8x128xf32>
    %c0_63 = arith.constant 0 : index
    %c0_64 = arith.constant 0 : index
    %107 = vector.load %arg21[%c0_63, %c0_64] : memref<8x128xf32, #tpu.memory_space<vmem>>, vector<8x128xf32>
    tpu.vector_store %arg21[%c0_63, %c0_64], %106 {strides = array<i32>} : memref<8x128xf32, #tpu.memory_space<vmem>>, vector<8x128xf32>,
    %c0_65 = arith.constant 0 : index
    %c0_66 = arith.constant 0 : index
    %108 = vector.load %arg15[%c0_65, %c0_66] : memref<128x128xf32, #tpu.memory_space<vmem>>, vector<128x128xf32>
    %cst_67 = arith.constant dense<0.000000e+00> : vector<16x128xf32>
    %109 = tpu.matmul %80, %108, %cst_67 {dimension_numbers = #tpu.dot_dimension_numbers<[1], [0], [0], [1], [0, 0, 1, 1], [], []>} : vector<16x128xf32>, vector<128x128xf32>, vector<16x128xf32> -> vector<16x128xf32>
    %c0_68 = arith.constant 0 : index
    %c0_69 = arith.constant 0 : index
    %110 = vector.load %arg16[%c0_68, %c0_69] : memref<1x128xf32, #tpu.memory_space<vmem>>, vector<1x128xf32>
    %111 = vector.broadcast %110 : vector<1x128xf32> to vector<16x128xf32>
    %112 = arith.addf %109, %111 : vector<16x128xf32>
    %c0_70 = arith.constant 0 : index
    %c0_71 = arith.constant 0 : index
    %113 = vector.load %arg17[%c0_70, %c0_71] : memref<1x128xf32, #tpu.memory_space<vmem>>, vector<1x128xf32>
    %c0_72 = arith.constant 0 : index
    %c0_73 = arith.constant 0 : index
    %114 = vector.load %arg18[%c0_72, %c0_73] : memref<1x128xf32, #tpu.memory_space<vmem>>, vector<1x128xf32>
    %cst_74 = arith.constant 1.000000e+00 : f32
    %115 = vector.broadcast %cst_74 : f32 to vector<1x16xf32>
    %cst_75 = arith.constant dense<0.000000e+00> : vector<1x128xf32>
    %116 = tpu.matmul %115, %112, %cst_75 {dimension_numbers = #tpu.dot_dimension_numbers<[1], [0], [0], [1], [0, 0, 1, 1], [], []>} : vector<1x16xf32>, vector<16x128xf32>, vector<1x128xf32> -> vector<1x128xf32>
    %cst_76 = arith.constant 6.250000e-02 : f32
    %117 = vector.broadcast %cst_76 : f32 to vector<1x128xf32>
    %118 = arith.mulf %116, %117 : vector<1x128xf32>
    %119 = vector.broadcast %118 : vector<1x128xf32> to vector<16x128xf32>
    %120 = arith.subf %112, %119 : vector<16x128xf32>
    %121 = arith.mulf %120, %120 : vector<16x128xf32>
    %cst_77 = arith.constant dense<0.000000e+00> : vector<1x128xf32>
    %122 = tpu.matmul %115, %121, %cst_77 {dimension_numbers = #tpu.dot_dimension_numbers<[1], [0], [0], [1], [0, 0, 1, 1], [], []>} : vector<1x16xf32>, vector<16x128xf32>, vector<1x128xf32> -> vector<1x128xf32>
    %cst_78 = arith.constant 6.250000e-02 : f32
    %123 = vector.broadcast %cst_78 : f32 to vector<1x128xf32>
    %124 = arith.mulf %122, %123 : vector<1x128xf32>
    %cst_79 = arith.constant 9.99999974E-6 : f32
    %125 = vector.broadcast %cst_79 : f32 to vector<1x128xf32>
    %126 = arith.addf %124, %125 : vector<1x128xf32>
    %127 = math.rsqrt %126 : vector<1x128xf32>
    %128 = vector.broadcast %127 : vector<1x128xf32> to vector<16x128xf32>
    %129 = arith.mulf %120, %128 : vector<16x128xf32>
    %130 = vector.broadcast %113 : vector<1x128xf32> to vector<16x128xf32>
    %131 = arith.mulf %129, %130 : vector<16x128xf32>
    %132 = vector.broadcast %114 : vector<1x128xf32> to vector<16x128xf32>
    %133 = arith.addf %131, %132 : vector<16x128xf32>
    %c0_80 = arith.constant 0 : index
    %c0_81 = arith.constant 0 : index
    %134 = vector.load %arg22[%c0_80, %c0_81] : memref<16x128xf32, #tpu.memory_space<vmem>>, vector<16x128xf32>
    tpu.vector_store %arg22[%c0_80, %c0_81], %133 {strides = array<i32>} : memref<16x128xf32, #tpu.memory_space<vmem>>, vector<16x128xf32>,
    return
  }
}

</mosaic_0001>

<llo_original>
// kernel: forward.1
$region0: #{forward.1}
  #allocation0 [shape = 'u32[]', space=smem, size = 0x4, offset = 0x4, fixed_abs, tag = 'smem constant byte address 0x4 - core index']
  #allocation1 [shape = 'u32[144,128]{1,0:T(1,128)}', space=vmem, size = 0x12000, scoped, tag = 'internal scratch']
  %s0 = inlined_call_operand.vmem [shape: f32[8,16], index: 0, kind: input, shape index: {}]
  %s1 = inlined_call_operand.vmem [shape: f32[16,12], index: 1, kind: input, shape index: {}]
  %s2 = inlined_call_operand.vmem [shape: f32[8,16], index: 2, kind: input, shape index: {}]
  %s3 = inlined_call_operand.hbm [shape: f32[16,128], index: 3, kind: input, shape index: {}]
  %s4 = inlined_call_operand.hbm [shape: f32[1,128], index: 4, kind: input, shape index: {}]
  %s5 = inlined_call_operand.hbm [shape: f32[1,128], index: 5, kind: input, shape index: {}]
  %s6 = inlined_call_operand.hbm [shape: f32[1,128], index: 6, kind: input, shape index: {}]
  %s7 = inlined_call_operand.hbm [shape: f32[12,128], index: 7, kind: input, shape index: {}]
  %s8 = inlined_call_operand.hbm [shape: f32[1,128], index: 8, kind: input, shape index: {}]
  %s9 = inlined_call_operand.hbm [shape: f32[1,128], index: 9, kind: input, shape index: {}]
  %s10 = inlined_call_operand.hbm [shape: f32[1,128], index: 10, kind: input, shape index: {}]
  %s11 = inlined_call_operand.hbm [shape: f32[128,128], index: 11, kind: input, shape index: {}]
  %s12 = inlined_call_operand.hbm [shape: f32[1,128], index: 12, kind: input, shape index: {}]
  %s13 = inlined_call_operand.hbm [shape: f32[1,128], index: 13, kind: input, shape index: {}]
  %s14 = inlined_call_operand.hbm [shape: f32[1,128], index: 14, kind: input, shape index: {}]
  %s15 = inlined_call_operand.hbm [shape: f32[128,128], index: 15, kind: input, shape index: {}]
  %s16 = inlined_call_operand.hbm [shape: f32[1,128], index: 16, kind: input, shape index: {}]
  %s17 = inlined_call_operand.hbm [shape: f32[1,128], index: 17, kind: input, shape index: {}]
  %s18 = inlined_call_operand.hbm [shape: f32[1,128], index: 18, kind: input, shape index: {}]
  %s19 = inlined_call_operand.hbm [shape: f32[8,128], index: 19, kind: output, shape index: {0}]
  %s20 = inlined_call_operand.hbm [shape: f32[16,128], index: 20, kind: output, shape index: {1}]
  %s21 = inlined_call_operand.hbm [shape: f32[8,128], index: 21, kind: output, shape index: {2}]
  %s22 = inlined_call_operand.hbm [shape: f32[16,128], index: 22, kind: output, shape index: {3}]
  %23 = xla_tuple %s19, %s20, %s21, %s22
  %s24 = sld [smem:[#allocation0]]
  $region174: #{forward.1} parent=0
    _
  %s26 = ssub.s32 1, %s24
  %s27 = scalar_select 0, %s26, %s24
  $region1: #{forward.1} parent=0
    #allocation2 [shape = 'u8[8192]{0}', space=vmem, size = 0x2000, scoped, tag = 'input window, operand 3, single buffered']
    #allocation3 [shape = 's32[1]{0}', space=sflag, size = 0x4, scoped, tag = 'scoped memory for forward.1']
    #allocation4 [shape = 's32[1]{0}', space=sflag, size = 0x4, scoped, tag = 'scoped memory for forward.1']
    #allocation5 [shape = 'u8[512]{0}', space=vmem, size = 0x400, scoped, tag = 'input window, operand 4, single buffered']
    #allocation6 [shape = 's32[1]{0}', space=sflag, size = 0x4, scoped, tag = 'scoped memory for forward.1']
    #allocation7 [shape = 'u8[512]{0}', space=vmem, size = 0x400, scoped, tag = 'input window, operand 5, single buffered']
    #allocation8 [shape = 'u8[512]{0}', space=vmem, size = 0x400, scoped, tag = 'input window, operand 6, single buffered']
    #allocation9 [shape = 's32[1]{0}', space=sflag, size = 0x4, scoped, tag = 'scoped memory for forward.1']
    #allocation10 [shape = 'u8[8192]{0}', space=vmem, size = 0x2000, scoped, tag = 'input window, operand 7, single buffered']
    #allocation11 [shape = 'u8[512]{0}', space=vmem, size = 0x400, scoped, tag = 'input window, operand 8, single buffered']
    #allocation12 [shape = 's32[1]{0}', space=sflag, size = 0x4, scoped, tag = 'scoped memory for forward.1']
    #allocation13 [shape = 'u8[512]{0}', space=vmem, size = 0x400, scoped, tag = 'input window, operand 9, single buffered']
    #allocation14 [shape = 'u8[512]{0}', space=vmem, size = 0x400, scoped, tag = 'input window, operand 10, single buffered']
    #allocation15 [shape = 's32[1]{0}', space=sflag, size = 0x4, scoped, tag = 'scoped memory for forward.1']
    #allocation16 [shape = 'u8[65536]{0}', space=vmem, size = 0x10000, scoped, tag = 'input window, operand 11, single buffered']
    #allocation17 [shape = 'u8[512]{0}', space=vmem, size = 0x400, scoped, tag = 'input window, operand 12, single buffered']
    #allocation18 [shape = 's32[1]{0}', space=sflag, size = 0x4, scoped, tag = 'scoped memory for forward.1']
    #allocation19 [shape = 'u8[512]{0}', space=vmem, size = 0x400, scoped, tag = 'input window, operand 13, single buffered']
    #allocation20 [shape = 'u8[512]{0}', space=vmem, size = 0x400, scoped, tag = 'input window, operand 14, single buffered']
    #allocation21 [shape = 's32[1]{0}', space=sflag, size = 0x4, scoped, tag = 'scoped memory for forward.1']
    #allocation22 [shape = 'u8[65536]{0}', space=vmem, size = 0x10000, scoped, tag = 'input window, operand 15, single buffered']
    #allocation23 [shape = 'u8[512]{0}', space=vmem, size = 0x400, scoped, tag = 'input window, operand 16, single buffered']
    #allocation24 [shape = 's32[1]{0}', space=sflag, size = 0x4, scoped, tag = 'scoped memory for forward.1']
    #allocation25 [shape = 'u8[512]{0}', space=vmem, size = 0x400, scoped, tag = 'input window, operand 17, single buffered']
    #allocation26 [shape = 'u8[512]{0}', space=vmem, size = 0x400, scoped, tag = 'input window, operand 18, single buffered']
    #allocation27 [shape = 's32[1]{0}', space=sflag, size = 0x4, scoped, tag = 'scoped memory for forward.1']
    #allocation28 [shape = 'u8[4096]{0}', space=vmem, size = 0x1000, scoped, tag = 'output window, operand 0, single buffered']
    #allocation29 [shape = 'u8[8192]{0}', space=vmem, size = 0x2000, scoped, tag = 'output window, operand 1, single buffered']
    #allocation30 [shape = 's32[1]{0}', space=sflag, size = 0x4, scoped, tag = 'scoped memory for forward.1']
    #allocation31 [shape = 'u8[4096]{0}', space=vmem, size = 0x1000, scoped, tag = 'output window, operand 2, single buffered']
    #allocation32 [shape = 'u8[8192]{0}', space=vmem, size = 0x2000, scoped, tag = 'output window, operand 3, single buffered']
    #allocation33 [shape = 's32[1]{0}', space=sflag, size = 0x4, scoped, tag = 'scoped memory for forward.1']
    %28 = vsyncpa [#allocation3], 0
    %29 = vsyncpa [#allocation6], 0
    %30 = vsyncpa [#allocation9], 0
    %31 = vsyncpa [#allocation12], 0
    %32 = vsyncpa [#allocation15], 0
    %33 = vsyncpa [#allocation18], 0
    %34 = vsyncpa [#allocation21], 0
    %35 = vsyncpa [#allocation24], 0
    %36 = vsyncpa [#allocation27], 0
    %37 = vsyncpa [#allocation4], 0
    %38 = vsyncpa [#allocation30], 0
    %39 = vsyncpa [#allocation33], 0
    // Predicated region
    $region2: #{forward.1} parent=1 // pred_check
      _
    $region3: #{forward.1} parent=1 // pred_check_branch
      %41 = sbr.rel (0) target = $region5
    $region4: #{forward.1} parent=1 // pred_region
      _
    $region5: #{forward.1} parent=1 // pred_fallthru
      _
    // Predicated region
    $region6: #{forward.1} parent=1 // pred_check
      _
    $region7: #{forward.1} parent=1 // pred_check_branch
      %43 = sbr.rel (0) target = $region9
    $region8: #{forward.1} parent=1 // pred_region
      _
    $region9: #{forward.1} parent=1 // pred_fallthru
      _
    // Predicated region
    $region10: #{forward.1} parent=1 // pred_check
      _
    $region11: #{forward.1} parent=1 // pred_check_branch
      %45 = sbr.rel (0) target = $region13
    $region12: #{forward.1} parent=1 // pred_region
      _
    $region13: #{forward.1} parent=1 // pred_fallthru
      _
    // Predicated region
    $region14: #{forward.1} parent=1 // pred_check
      _
    $region15: #{forward.1} parent=1 // pred_check_branch
      %47 = sbr.rel (0) target = $region17
    $region16: #{forward.1} parent=1 // pred_region
      %s49 = ssub.s32 256, 256
      %50 = vsyncadd [#allocation3], %s49
      %s51 = sshll.u32 [#allocation2], 4
      %s52 = int_to_ptr.vmem [resolvable:$true] %s51
      %57 = dma.hbm_to_vmem [thread:$0]  %s3, 256, %s52, [#allocation3], 128, 128, 8
    $region17: #{forward.1} parent=1 // pred_fallthru
      _
    // Predicated region
    $region18: #{forward.1} parent=1 // pred_check
      _
    $region19: #{forward.1} parent=1 // pred_check_branch
      %59 = sbr.rel (0) target = $region21
    $region20: #{forward.1} parent=1 // pred_region
      %s61 = ssub.s32 16, 16
      %62 = vsyncadd [#allocation6], %s61
      %s64 = sshll.u32 [#allocation5], 4
      %s65 = int_to_ptr.vmem [resolvable:$true] %s64
      %67 = dma.hbm_to_vmem [thread:$0]  %s4, 16, %s65, [#allocation6]
    $region21: #{forward.1} parent=1 // pred_fallthru
      _
    // Predicated region
    $region22: #{forward.1} parent=1 // pred_check
      _
    $region23: #{forward.1} parent=1 // pred_check_branch
      %69 = sbr.rel (0) target = $region25
    $region24: #{forward.1} parent=1 // pred_region
      %s71 = ssub.s32 16, 16
      %72 = vsyncadd [#allocation6], %s71
      %s74 = sshll.u32 [#allocation7], 4
      %s75 = int_to_ptr.vmem [resolvable:$true] %s74
      %77 = dma.hbm_to_vmem [thread:$0]  %s5, 16, %s75, [#allocation6]
    $region25: #{forward.1} parent=1 // pred_fallthru
      _
    // Predicated region
    $region26: #{forward.1} parent=1 // pred_check
      _
    $region27: #{forward.1} parent=1 // pred_check_branch
      %79 = sbr.rel (0) target = $region29
    $region28: #{forward.1} parent=1 // pred_region
      %s81 = ssub.s32 16, 16
      %82 = vsyncadd [#allocation9], %s81
      %s84 = sshll.u32 [#allocation8], 4
      %s85 = int_to_ptr.vmem [resolvable:$true] %s84
      %87 = dma.hbm_to_vmem [thread:$0]  %s6, 16, %s85, [#allocation9]
    $region29: #{forward.1} parent=1 // pred_fallthru
      _
    // Predicated region
    $region30: #{forward.1} parent=1 // pred_check
      _
    $region31: #{forward.1} parent=1 // pred_check_branch
      %89 = sbr.rel (0) target = $region33
    $region32: #{forward.1} parent=1 // pred_region
      %s91 = ssub.s32 256, 256
      %92 = vsyncadd [#allocation9], %s91
      %s93 = sshll.u32 [#allocation10], 4
      %s94 = int_to_ptr.vmem [resolvable:$true] %s93
      %99 = dma.hbm_to_vmem [thread:$0]  %s7, 256, %s94, [#allocation9], 128, 128, 8
    $region33: #{forward.1} parent=1 // pred_fallthru
      _
    // Predicated region
    $region34: #{forward.1} parent=1 // pred_check
      _
    $region35: #{forward.1} parent=1 // pred_check_branch
      %101 = sbr.rel (0) target = $region37
    $region36: #{forward.1} parent=1 // pred_region
      %s103 = ssub.s32 16, 16
      %104 = vsyncadd [#allocation12], %s103
      %s106 = sshll.u32 [#allocation11], 4
      %s107 = int_to_ptr.vmem [resolvable:$true] %s106
      %109 = dma.hbm_to_vmem [thread:$0]  %s8, 16, %s107, [#allocation12]
    $region37: #{forward.1} parent=1 // pred_fallthru
      _
    // Predicated region
    $region38: #{forward.1} parent=1 // pred_check
      _
    $region39: #{forward.1} parent=1 // pred_check_branch
      %111 = sbr.rel (0) target = $region41
    $region40: #{forward.1} parent=1 // pred_region
      %s113 = ssub.s32 16, 16
      %114 = vsyncadd [#allocation12], %s113
      %s116 = sshll.u32 [#allocation13], 4
      %s117 = int_to_ptr.vmem [resolvable:$true] %s116
      %119 = dma.hbm_to_vmem [thread:$0]  %s9, 16, %s117, [#allocation12]
    $region41: #{forward.1} parent=1 // pred_fallthru
      _
    // Predicated region
    $region42: #{forward.1} parent=1 // pred_check
      _
    $region43: #{forward.1} parent=1 // pred_check_branch
      %121 = sbr.rel (0) target = $region45
    $region44: #{forward.1} parent=1 // pred_region
      %s123 = ssub.s32 16, 16
      %124 = vsyncadd [#allocation15], %s123
      %s126 = sshll.u32 [#allocation14], 4
      %s127 = int_to_ptr.vmem [resolvable:$true] %s126
      %129 = dma.hbm_to_vmem [thread:$0]  %s10, 16, %s127, [#allocation15]
    $region45: #{forward.1} parent=1 // pred_fallthru
      _
    // Predicated region
    $region46: #{forward.1} parent=1 // pred_check
      _
    $region47: #{forward.1} parent=1 // pred_check_branch
      %131 = sbr.rel (0) target = $region49
    $region48: #{forward.1} parent=1 // pred_region
      %s133 = ssub.s32 2048, 2048
      %134 = vsyncadd [#allocation15], %s133
      %s135 = sshll.u32 [#allocation16], 4
      %s136 = int_to_ptr.vmem [resolvable:$true] %s135
      %141 = dma.hbm_to_vmem [thread:$0]  %s11, 2048, %s136, [#allocation15], 128, 128, 8
    $region49: #{forward.1} parent=1 // pred_fallthru
      _
    // Predicated region
    $region50: #{forward.1} parent=1 // pred_check
      _
    $region51: #{forward.1} parent=1 // pred_check_branch
      %143 = sbr.rel (0) target = $region53
    $region52: #{forward.1} parent=1 // pred_region
      %s145 = ssub.s32 16, 16
      %146 = vsyncadd [#allocation18], %s145
      %s148 = sshll.u32 [#allocation17], 4
      %s149 = int_to_ptr.vmem [resolvable:$true] %s148
      %151 = dma.hbm_to_vmem [thread:$0]  %s12, 16, %s149, [#allocation18]
    $region53: #{forward.1} parent=1 // pred_fallthru
      _
    // Predicated region
    $region54: #{forward.1} parent=1 // pred_check
      _
    $region55: #{forward.1} parent=1 // pred_check_branch
      %153 = sbr.rel (0) target = $region57
    $region56: #{forward.1} parent=1 // pred_region
      %s155 = ssub.s32 16, 16
      %156 = vsyncadd [#allocation18], %s155
      %s158 = sshll.u32 [#allocation19], 4
      %s159 = int_to_ptr.vmem [resolvable:$true] %s158
      %161 = dma.hbm_to_vmem [thread:$0]  %s13, 16, %s159, [#allocation18]
    $region57: #{forward.1} parent=1 // pred_fallthru
      _
    // Predicated region
    $region58: #{forward.1} parent=1 // pred_check
      _
    $region59: #{forward.1} parent=1 // pred_check_branch
      %163 = sbr.rel (0) target = $region61
    $region60: #{forward.1} parent=1 // pred_region
      %s165 = ssub.s32 16, 16
      %166 = vsyncadd [#allocation21], %s165
      %s168 = sshll.u32 [#allocation20], 4
      %s169 = int_to_ptr.vmem [resolvable:$true] %s168
      %171 = dma.hbm_to_vmem [thread:$0]  %s14, 16, %s169, [#allocation21]
    $region61: #{forward.1} parent=1 // pred_fallthru
      _
    // Predicated region
    $region62: #{forward.1} parent=1 // pred_check
      _
    $region63: #{forward.1} parent=1 // pred_check_branch
      %173 = sbr.rel (0) target = $region65
    $region64: #{forward.1} parent=1 // pred_region
      %s175 = ssub.s32 2048, 2048
      %176 = vsyncadd [#allocation21], %s175
      %s177 = sshll.u32 [#allocation22], 4
      %s178 = int_to_ptr.vmem [resolvable:$true] %s177
      %183 = dma.hbm_to_vmem [thread:$0]  %s15, 2048, %s178, [#allocation21], 128, 128, 8
    $region65: #{forward.1} parent=1 // pred_fallthru
      _
    // Predicated region
    $region66: #{forward.1} parent=1 // pred_check
      _
    $region67: #{forward.1} parent=1 // pred_check_branch
      %185 = sbr.rel (0) target = $region69
    $region68: #{forward.1} parent=1 // pred_region
      %s187 = ssub.s32 16, 16
      %188 = vsyncadd [#allocation24], %s187
      %s190 = sshll.u32 [#allocation23], 4
      %s191 = int_to_ptr.vmem [resolvable:$true] %s190
      %193 = dma.hbm_to_vmem [thread:$0]  %s16, 16, %s191, [#allocation24]
    $region69: #{forward.1} parent=1 // pred_fallthru
      _
    // Predicated region
    $region70: #{forward.1} parent=1 // pred_check
      _
    $region71: #{forward.1} parent=1 // pred_check_branch
      %195 = sbr.rel (0) target = $region73
    $region72: #{forward.1} parent=1 // pred_region
      %s197 = ssub.s32 16, 16
      %198 = vsyncadd [#allocation24], %s197
      %s200 = sshll.u32 [#allocation25], 4
      %s201 = int_to_ptr.vmem [resolvable:$true] %s200
      %203 = dma.hbm_to_vmem [thread:$0]  %s17, 16, %s201, [#allocation24]
    $region73: #{forward.1} parent=1 // pred_fallthru
      _
    // Predicated region
    $region74: #{forward.1} parent=1 // pred_check
      _
    $region75: #{forward.1} parent=1 // pred_check_branch
      %205 = sbr.rel (0) target = $region77
    $region76: #{forward.1} parent=1 // pred_region
      %s207 = ssub.s32 16, 16
      %208 = vsyncadd [#allocation27], %s207
      %s210 = sshll.u32 [#allocation26], 4
      %s211 = int_to_ptr.vmem [resolvable:$true] %s210
      %213 = dma.hbm_to_vmem [thread:$0]  %s18, 16, %s211, [#allocation27]
    $region77: #{forward.1} parent=1 // pred_fallthru
      _
    // Predicated region
    $region78: #{forward.1} parent=1 // pred_check
      _
    $region79: #{forward.1} parent=1 // pred_check_branch
      %215 = sbr.rel (0) target = $region81
    $region80: #{forward.1} parent=1 // pred_region
      %216 = dma.done [#allocation3], 256
    $region81: #{forward.1} parent=1 // pred_fallthru
      _
    // Predicated region
    $region82: #{forward.1} parent=1 // pred_check
      _
    $region83: #{forward.1} parent=1 // pred_check_branch
      %218 = sbr.rel (0) target = $region85
    $region84: #{forward.1} parent=1 // pred_region
      %219 = dma.done [#allocation6], 16
    $region85: #{forward.1} parent=1 // pred_fallthru
      _
    // Predicated region
    $region86: #{forward.1} parent=1 // pred_check
      _
    $region87: #{forward.1} parent=1 // pred_check_branch
      %221 = sbr.rel (0) target = $region89
    $region88: #{forward.1} parent=1 // pred_region
      %222 = dma.done [#allocation6], 16
    $region89: #{forward.1} parent=1 // pred_fallthru
      _
    // Predicated region
    $region90: #{forward.1} parent=1 // pred_check
      _
    $region91: #{forward.1} parent=1 // pred_check_branch
      %224 = sbr.rel (0) target = $region93
    $region92: #{forward.1} parent=1 // pred_region
      %225 = dma.done [#allocation9], 16
    $region93: #{forward.1} parent=1 // pred_fallthru
      _
    // Predicated region
    $region94: #{forward.1} parent=1 // pred_check
      _
    $region95: #{forward.1} parent=1 // pred_check_branch
      %227 = sbr.rel (0) target = $region97
    $region96: #{forward.1} parent=1 // pred_region
      %228 = dma.done [#allocation9], 256
    $region97: #{forward.1} parent=1 // pred_fallthru
      _
    // Predicated region
    $region98: #{forward.1} parent=1 // pred_check
      _
    $region99: #{forward.1} parent=1 // pred_check_branch
      %230 = sbr.rel (0) target = $region101
    $region100: #{forward.1} parent=1 // pred_region
      %231 = dma.done [#allocation12], 16
    $region101: #{forward.1} parent=1 // pred_fallthru
      _
    // Predicated region
    $region102: #{forward.1} parent=1 // pred_check
      _
    $region103: #{forward.1} parent=1 // pred_check_branch
      %233 = sbr.rel (0) target = $region105
    $region104: #{forward.1} parent=1 // pred_region
      %234 = dma.done [#allocation12], 16
    $region105: #{forward.1} parent=1 // pred_fallthru
      _
    // Predicated region
    $region106: #{forward.1} parent=1 // pred_check
      _
    $region107: #{forward.1} parent=1 // pred_check_branch
      %236 = sbr.rel (0) target = $region109
    $region108: #{forward.1} parent=1 // pred_region
      %237 = dma.done [#allocation15], 16
    $region109: #{forward.1} parent=1 // pred_fallthru
      _
    // Predicated region
    $region110: #{forward.1} parent=1 // pred_check
      _
    $region111: #{forward.1} parent=1 // pred_check_branch
      %239 = sbr.rel (0) target = $region113
    $region112: #{forward.1} parent=1 // pred_region
      %240 = dma.done [#allocation15], 2048
    $region113: #{forward.1} parent=1 // pred_fallthru
      _
    // Predicated region
    $region114: #{forward.1} parent=1 // pred_check
      _
    $region115: #{forward.1} parent=1 // pred_check_branch
      %242 = sbr.rel (0) target = $region117
    $region116: #{forward.1} parent=1 // pred_region
      %243 = dma.done [#allocation18], 16
    $region117: #{forward.1} parent=1 // pred_fallthru
      _
    // Predicated region
    $region118: #{forward.1} parent=1 // pred_check
      _
    $region119: #{forward.1} parent=1 // pred_check_branch
      %245 = sbr.rel (0) target = $region121
    $region120: #{forward.1} parent=1 // pred_region
      %246 = dma.done [#allocation18], 16
    $region121: #{forward.1} parent=1 // pred_fallthru
      _
    // Predicated region
    $region122: #{forward.1} parent=1 // pred_check
      _
    $region123: #{forward.1} parent=1 // pred_check_branch
      %248 = sbr.rel (0) target = $region125
    $region124: #{forward.1} parent=1 // pred_region
      %249 = dma.done [#allocation21], 16
    $region125: #{forward.1} parent=1 // pred_fallthru
      _
    // Predicated region
    $region126: #{forward.1} parent=1 // pred_check
      _
    $region127: #{forward.1} parent=1 // pred_check_branch
      %251 = sbr.rel (0) target = $region129
    $region128: #{forward.1} parent=1 // pred_region
      %252 = dma.done [#allocation21], 2048
    $region129: #{forward.1} parent=1 // pred_fallthru
      _
    // Predicated region
    $region130: #{forward.1} parent=1 // pred_check
      _
    $region131: #{forward.1} parent=1 // pred_check_branch
      %254 = sbr.rel (0) target = $region133
    $region132: #{forward.1} parent=1 // pred_region
      %255 = dma.done [#allocation24], 16
    $region133: #{forward.1} parent=1 // pred_fallthru
      _
    // Predicated region
    $region134: #{forward.1} parent=1 // pred_check
      _
    $region135: #{forward.1} parent=1 // pred_check_branch
      %257 = sbr.rel (0) target = $region137
    $region136: #{forward.1} parent=1 // pred_region
      %258 = dma.done [#allocation24], 16
    $region137: #{forward.1} parent=1 // pred_fallthru
      _
    // Predicated region
    $region138: #{forward.1} parent=1 // pred_check
      _
    $region139: #{forward.1} parent=1 // pred_check_branch
      %260 = sbr.rel (0) target = $region141
    $region140: #{forward.1} parent=1 // pred_region
      %261 = dma.done [#allocation27], 16
    $region141: #{forward.1} parent=1 // pred_fallthru
      _
    %v262 = vld [vmem:[%s0] sm:$0xff]
    %v263 = vld [vmem:[#allocation2] sm:$0xff]
    %v264 = vld [vmem:[#allocation2 + $0x8] sm:$0xff]
    %v265 = vld [vmem:[#allocation5] sm:$0x1]
    %v267 = vlaneseq
    %v268 = vshrl.u32 %v267, 7
    %v269 = vsub.s32 0, %v268
    %v270 = vrot.slane %v265, %v269
    %vm272 = vcmask 130048
    %v274 = vsel %vm272, %v262, 0
    %276 = vmatprep.subr.mxu0 0.0
    %277 = vmatpush1.msra.mxu0 0.0
    %278 = vmatprep.subr.mxu0 0.0
    %279 = vmatpush1.msra.mxu0 0.0
    %280 = vmatprep.subr.mxu0 0.0
    %281 = vmatpush1.msra.mxu0 0.0
    %282 = vmatprep.subr.mxu0 0.0
    %283 = vmatpush1.msra.mxu0 0.0
    %284 = vmatprep.subr.mxu0 0.0
    %285 = vmatpush1.msra.mxu0 0.0
    %286 = vmatprep.subr.mxu0 0.0
    %287 = vmatpush1.msra.mxu0 0.0
    %288 = vmatprep.subr.mxu0 0.0
    %289 = vmatpush1.msra.mxu0 0.0
    %290 = vmatprep.subr.mxu0 0.0
    %291 = vmatpush1.msra.mxu0 0.0
    %292 = vmatprep.subr.mxu0 0.0
    %293 = vmatpush1.msra.mxu0 0.0
    %294 = vmatprep.subr.mxu0 0.0
    %295 = vmatpush1.msra.mxu0 0.0
    %296 = vmatprep.subr.mxu0 0.0
    %297 = vmatpush1.msra.mxu0 0.0
    %298 = vmatprep.subr.mxu0 0.0
    %299 = vmatpush1.msra.mxu0 0.0
    %300 = vmatprep.subr.mxu0 0.0
    %301 = vmatpush1.msra.mxu0 0.0
    %302 = vmatprep.subr.mxu0 0.0
    %303 = vmatpush1.msra.mxu0 0.0
    %304 = vmatprep.subr.mxu0 0.0
    %305 = vmatpush1.msra.mxu0 %v264
    %306 = vmatprep.subr.mxu0 0.0
    %307 = vmatpush1.msra.mxu0 %v263
    %308 = vmatprep.subr.mxu0 0.0
    %309 = vmatpush2.msra.mxu0 0.0
    %310 = vmatprep.subr.mxu0 0.0
    %311 = vmatpush2.msra.mxu0 0.0
    %312 = vmatprep.subr.mxu0 0.0
    %313 = vmatpush2.msra.mxu0 0.0
    %314 = vmatprep.subr.mxu0 0.0
    %315 = vmatpush2.msra.mxu0 0.0
    %316 = vmatprep.subr.mxu0 0.0
    %317 = vmatpush2.msra.mxu0 0.0
    %318 = vmatprep.subr.mxu0 0.0
    %319 = vmatpush2.msra.mxu0 0.0
    %320 = vmatprep.subr.mxu0 0.0
    %321 = vmatpush2.msra.mxu0 0.0
    %322 = vmatprep.subr.mxu0 0.0
    %323 = vmatpush2.msra.mxu0 0.0
    %324 = vmatprep.subr.mxu0 0.0
    %325 = vmatpush2.msra.mxu0 0.0
    %326 = vmatprep.subr.mxu0 0.0
    %327 = vmatpush2.msra.mxu0 0.0
    %328 = vmatprep.subr.mxu0 0.0
    %329 = vmatpush2.msra.mxu0 0.0
    %330 = vmatprep.subr.mxu0 0.0
    %331 = vmatpush2.msra.mxu0 0.0
    %332 = vmatprep.subr.mxu0 0.0
    %333 = vmatpush2.msra.mxu0 0.0
    %334 = vmatprep.subr.mxu0 0.0
    %335 = vmatpush2.msra.mxu0 0.0
    %336 = vmatprep.subr.mxu0 0.0
    %337 = vmatpush2.msra.mxu0 0.0
    %338 = vmatprep.subr.mxu0 0.0
    %339 = vmatpush2.msra.mxu0 0.0
    %340 = vmatprep.mubr.f32.mxu0 0.0
    %341 = vmatmul.mubr.f32.gmra.mxu0 %v274
    %v342 = vpop.f32.mrf.mxu0
    %v343 = vadd.f32 %v270, %v342
    %v344 = vpop.f32.mrf.mxu0
    %345 = vdwg.mxu0
    %v346 = vld [vmem:[#allocation7] sm:$0x1]
    %v347 = vld [vmem:[#allocation8] sm:$0x1]
    %vm348 = vcmask 64512
    %v350 = vsel %vm348, 1.0, 0
    %352 = vmatprep.subr.mxu0 0.0
    %353 = vmatpush1.msra.mxu0 0.0
    %354 = vmatprep.subr.mxu0 0.0
    %355 = vmatpush1.msra.mxu0 0.0
    %356 = vmatprep.subr.mxu0 0.0
    %357 = vmatpush1.msra.mxu0 0.0
    %358 = vmatprep.subr.mxu0 0.0
    %359 = vmatpush1.msra.mxu0 0.0
    %360 = vmatprep.subr.mxu0 0.0
    %361 = vmatpush1.msra.mxu0 0.0
    %362 = vmatprep.subr.mxu0 0.0
    %363 = vmatpush1.msra.mxu0 0.0
    %364 = vmatprep.subr.mxu0 0.0
    %365 = vmatpush1.msra.mxu0 0.0
    %366 = vmatprep.subr.mxu0 0.0
    %367 = vmatpush1.msra.mxu0 0.0
    %368 = vmatprep.subr.mxu0 0.0
    %369 = vmatpush1.msra.mxu0 0.0
    %370 = vmatprep.subr.mxu0 0.0
    %371 = vmatpush1.msra.mxu0 0.0
    %372 = vmatprep.subr.mxu0 0.0
    %373 = vmatpush1.msra.mxu0 0.0
    %374 = vmatprep.subr.mxu0 0.0
    %375 = vmatpush1.msra.mxu0 0.0
    %376 = vmatprep.subr.mxu0 0.0
    %377 = vmatpush1.msra.mxu0 0.0
    %378 = vmatprep.subr.mxu0 0.0
    %379 = vmatpush1.msra.mxu0 0.0
    %380 = vmatprep.subr.mxu0 0.0
    %381 = vmatpush1.msra.mxu0 0.0
    %382 = vmatprep.subr.mxu0 0.0
    %383 = vmatpush1.msra.mxu0 %v343
    %384 = vmatprep.subr.mxu0 0.0
    %385 = vmatpush2.msra.mxu0 0.0
    %386 = vmatprep.subr.mxu0 0.0
    %387 = vmatpush2.msra.mxu0 0.0
    %388 = vmatprep.subr.mxu0 0.0
    %389 = vmatpush2.msra.mxu0 0.0
    %390 = vmatprep.subr.mxu0 0.0
    %391 = vmatpush2.msra.mxu0 0.0
    %392 = vmatprep.subr.mxu0 0.0
    %393 = vmatpush2.msra.mxu0 0.0
    %394 = vmatprep.subr.mxu0 0.0
    %395 = vmatpush2.msra.mxu0 0.0
    %396 = vmatprep.subr.mxu0 0.0
    %397 = vmatpush2.msra.mxu0 0.0
    %398 = vmatprep.subr.mxu0 0.0
    %399 = vmatpush2.msra.mxu0 0.0
    %400 = vmatprep.subr.mxu0 0.0
    %401 = vmatpush2.msra.mxu0 0.0
    %402 = vmatprep.subr.mxu0 0.0
    %403 = vmatpush2.msra.mxu0 0.0
    %404 = vmatprep.subr.mxu0 0.0
    %405 = vmatpush2.msra.mxu0 0.0
    %406 = vmatprep.subr.mxu0 0.0
    %407 = vmatpush2.msra.mxu0 0.0
    %408 = vmatprep.subr.mxu0 0.0
    %409 = vmatpush2.msra.mxu0 0.0
    %410 = vmatprep.subr.mxu0 0.0
    %411 = vmatpush2.msra.mxu0 0.0
    %412 = vmatprep.subr.mxu0 0.0
    %413 = vmatpush2.msra.mxu0 0.0
    %414 = vmatprep.subr.mxu0 0.0
    %415 = vmatpush2.msra.mxu0 0.0
    %416 = vmatprep.mubr.f32.mxu0 0.0
    %417 = vmatmul.mubr.f32.gmra.mxu0 %v350
    %v418 = vpop.f32.mrf.mxu0
    %v419 = vadd.f32 0.0, %v418
    %v420 = vpop.f32.mrf.mxu0
    %421 = vdwg.mxu0
    %v422 = vmul.f32 %v419, 0.125
    %v423 = vlaneseq
    %v424 = vshrl.u32 %v423, 7
    %v425 = vsub.s32 0, %v424
    %v426 = vrot.slane %v422, %v425
    %v427 = vsub.f32 %v343, %v426
    %v428 = vmul.f32 %v427, %v427
    %429 = vmatprep.subr.mxu0 0.0
    %430 = vmatpush1.msra.mxu0 0.0
    %431 = vmatprep.subr.mxu0 0.0
    %432 = vmatpush1.msra.mxu0 0.0
    %433 = vmatprep.subr.mxu0 0.0
    %434 = vmatpush1.msra.mxu0 0.0
    %435 = vmatprep.subr.mxu0 0.0
    %436 = vmatpush1.msra.mxu0 0.0
    %437 = vmatprep.subr.mxu0 0.0
    %438 = vmatpush1.msra.mxu0 0.0
    %439 = vmatprep.subr.mxu0 0.0
    %440 = vmatpush1.msra.mxu0 0.0
    %441 = vmatprep.subr.mxu0 0.0
    %442 = vmatpush1.msra.mxu0 0.0
    %443 = vmatprep.subr.mxu0 0.0
    %444 = vmatpush1.msra.mxu0 0.0
    %445 = vmatprep.subr.mxu0 0.0
    %446 = vmatpush1.msra.mxu0 0.0
    %447 = vmatprep.subr.mxu0 0.0
    %448 = vmatpush1.msra.mxu0 0.0
    %449 = vmatprep.subr.mxu0 0.0
    %450 = vmatpush1.msra.mxu0 0.0
    %451 = vmatprep.subr.mxu0 0.0
    %452 = vmatpush1.msra.mxu0 0.0
    %453 = vmatprep.subr.mxu0 0.0
    %454 = vmatpush1.msra.mxu0 0.0
    %455 = vmatprep.subr.mxu0 0.0
    %456 = vmatpush1.msra.mxu0 0.0
    %457 = vmatprep.subr.mxu0 0.0
    %458 = vmatpush1.msra.mxu0 0.0
    %459 = vmatprep.subr.mxu0 0.0
    %460 = vmatpush1.msra.mxu0 %v428
    %461 = vmatprep.subr.mxu0 0.0
    %462 = vmatpush2.msra.mxu0 0.0
    %463 = vmatprep.subr.mxu0 0.0
    %464 = vmatpush2.msra.mxu0 0.0
    %465 = vmatprep.subr.mxu0 0.0
    %466 = vmatpush2.msra.mxu0 0.0
    %467 = vmatprep.subr.mxu0 0.0
    %468 = vmatpush2.msra.mxu0 0.0
    %469 = vmatprep.subr.mxu0 0.0
    %470 = vmatpush2.msra.mxu0 0.0
    %471 = vmatprep.subr.mxu0 0.0
    %472 = vmatpush2.msra.mxu0 0.0
    %473 = vmatprep.subr.mxu0 0.0
    %474 = vmatpush2.msra.mxu0 0.0
    %475 = vmatprep.subr.mxu0 0.0
    %476 = vmatpush2.msra.mxu0 0.0
    %477 = vmatprep.subr.mxu0 0.0
    %478 = vmatpush2.msra.mxu0 0.0
    %479 = vmatprep.subr.mxu0 0.0
    %480 = vmatpush2.msra.mxu0 0.0
    %481 = vmatprep.subr.mxu0 0.0
    %482 = vmatpush2.msra.mxu0 0.0
    %483 = vmatprep.subr.mxu0 0.0
    %484 = vmatpush2.msra.mxu0 0.0
    %485 = vmatprep.subr.mxu0 0.0
    %486 = vmatpush2.msra.mxu0 0.0
    %487 = vmatprep.subr.mxu0 0.0
    %488 = vmatpush2.msra.mxu0 0.0
    %489 = vmatprep.subr.mxu0 0.0
    %490 = vmatpush2.msra.mxu0 0.0
    %491 = vmatprep.subr.mxu0 0.0
    %492 = vmatpush2.msra.mxu0 0.0
    %493 = vmatprep.mubr.f32.mxu0 0.0
    %494 = vmatmul.mubr.f32.gmra.mxu0 %v350
    %v495 = vpop.f32.mrf.mxu0
    %v496 = vadd.f32 0.0, %v495
    %v497 = vpop.f32.mrf.mxu0
    %498 = vdwg.mxu0
    %v499 = vmul.f32 %v496, 0.125
    %v500 = vadd.f32 %v499, 1e-05
    %v501 = vrsqrt.pop %v500
    %v502 = vlaneseq
    %v503 = vshrl.u32 %v502, 7
    %v504 = vsub.s32 0, %v503
    %v505 = vrot.slane %v501, %v504
    %v506 = vmul.f32 %v427, %v505
    %v508 = vlaneseq
    %v509 = vshrl.u32 %v508, 7
    %v510 = vsub.s32 0, %v509
    %v511 = vrot.slane %v346, %v510
    %v513 = vmul.f32 %v506, %v511
    %v515 = vlaneseq
    %v516 = vshrl.u32 %v515, 7
    %v517 = vsub.s32 0, %v516
    %v518 = vrot.slane %v347, %v517
    %v520 = vadd.f32 %v513, %v518
    %v521 = vld [vmem:[%s1] sm:$0xff]
    %v522 = vld [vmem:[%s1 + $0x8] sm:$0xff]
    %v523 = vld [vmem:[#allocation10] sm:$0xff]
    %v524 = vld [vmem:[#allocation10 + $0x8] sm:$0xf]
    %v525 = vld [vmem:[#allocation11] sm:$0x1]
    %v527 = vlaneseq
    %v528 = vshrl.u32 %v527, 7
    %v529 = vsub.s32 0, %v528
    %v530 = vrot.slane %v525, %v529
    %vm532 = vcmask 97280
    %v534 = vsel %vm532, %v521, 0
    %v537 = vsel %vm532, %v522, 0
    %vm539 = vcmask 1043456
    %v541 = vsel %vm539, %v524, 0
    %543 = vmatprep.subr.mxu0 0.0
    %544 = vmatpush1.msra.mxu0 0.0
    %545 = vmatprep.subr.mxu0 0.0
    %546 = vmatpush1.msra.mxu0 0.0
    %547 = vmatprep.subr.mxu0 0.0
    %548 = vmatpush1.msra.mxu0 0.0
    %549 = vmatprep.subr.mxu0 0.0
    %550 = vmatpush1.msra.mxu0 0.0
    %551 = vmatprep.subr.mxu0 0.0
    %552 = vmatpush1.msra.mxu0 0.0
    %553 = vmatprep.subr.mxu0 0.0
    %554 = vmatpush1.msra.mxu0 0.0
    %555 = vmatprep.subr.mxu0 0.0
    %556 = vmatpush1.msra.mxu0 0.0
    %557 = vmatprep.subr.mxu0 0.0
    %558 = vmatpush1.msra.mxu0 0.0
    %559 = vmatprep.subr.mxu0 0.0
    %560 = vmatpush1.msra.mxu0 0.0
    %561 = vmatprep.subr.mxu0 0.0
    %562 = vmatpush1.msra.mxu0 0.0
    %563 = vmatprep.subr.mxu0 0.0
    %564 = vmatpush1.msra.mxu0 0.0
    %565 = vmatprep.subr.mxu0 0.0
    %566 = vmatpush1.msra.mxu0 0.0
    %567 = vmatprep.subr.mxu0 0.0
    %568 = vmatpush1.msra.mxu0 0.0
    %569 = vmatprep.subr.mxu0 0.0
    %570 = vmatpush1.msra.mxu0 0.0
    %571 = vmatprep.subr.mxu0 0.0
    %572 = vmatpush1.msra.mxu0 %v541
    %573 = vmatprep.subr.mxu0 0.0
    %574 = vmatpush1.msra.mxu0 %v523
    %575 = vmatprep.subr.mxu0 0.0
    %576 = vmatpush2.msra.mxu0 0.0
    %577 = vmatprep.subr.mxu0 0.0
    %578 = vmatpush2.msra.mxu0 0.0
    %579 = vmatprep.subr.mxu0 0.0
    %580 = vmatpush2.msra.mxu0 0.0
    %581 = vmatprep.subr.mxu0 0.0
    %582 = vmatpush2.msra.mxu0 0.0
    %583 = vmatprep.subr.mxu0 0.0
    %584 = vmatpush2.msra.mxu0 0.0
    %585 = vmatprep.subr.mxu0 0.0
    %586 = vmatpush2.msra.mxu0 0.0
    %587 = vmatprep.subr.mxu0 0.0
    %588 = vmatpush2.msra.mxu0 0.0
    %589 = vmatprep.subr.mxu0 0.0
    %590 = vmatpush2.msra.mxu0 0.0
    %591 = vmatprep.subr.mxu0 0.0
    %592 = vmatpush2.msra.mxu0 0.0
    %593 = vmatprep.subr.mxu0 0.0
    %594 = vmatpush2.msra.mxu0 0.0
    %595 = vmatprep.subr.mxu0 0.0
    %596 = vmatpush2.msra.mxu0 0.0
    %597 = vmatprep.subr.mxu0 0.0
    %598 = vmatpush2.msra.mxu0 0.0
    %599 = vmatprep.subr.mxu0 0.0
    %600 = vmatpush2.msra.mxu0 0.0
    %601 = vmatprep.subr.mxu0 0.0
    %602 = vmatpush2.msra.mxu0 0.0
    %603 = vmatprep.subr.mxu0 0.0
    %604 = vmatpush2.msra.mxu0 0.0
    %605 = vmatprep.subr.mxu0 0.0
    %606 = vmatpush2.msra.mxu0 0.0
    %607 = vmatprep.mubr.f32.mxu0 0.0
    %608 = vmatmul.mubr.f32.gmra.mxu0 %v534
    %v609 = vpop.f32.mrf.mxu0
    %v610 = vadd.f32 %v530, %v609
    %v611 = vpop.f32.mrf.mxu0
    %612 = vmatprep.mubr.f32.mxu0 0.0
    %613 = vmatmul.mubr.f32.gmra.mxu0 %v537
    %v614 = vpop.f32.mrf.mxu0
    %v615 = vadd.f32 %v530, %v614
    %v616 = vpop.f32.mrf.mxu0
    %617 = vdwg.mxu0
    %v618 = vld [vmem:[#allocation13] sm:$0x1]
    %v619 = vld [vmem:[#allocation14] sm:$0x1]
    %v620 = vsel %vm272, 1.0, 0
    %622 = vmatprep.subr.mxu0 0.0
    %623 = vmatpush1.msra.mxu0 0.0
    %624 = vmatprep.subr.mxu0 0.0
    %625 = vmatpush1.msra.mxu0 0.0
    %626 = vmatprep.subr.mxu0 0.0
    %627 = vmatpush1.msra.mxu0 0.0
    %628 = vmatprep.subr.mxu0 0.0
    %629 = vmatpush1.msra.mxu0 0.0
    %630 = vmatprep.subr.mxu0 0.0
    %631 = vmatpush1.msra.mxu0 0.0
    %632 = vmatprep.subr.mxu0 0.0
    %633 = vmatpush1.msra.mxu0 0.0
    %634 = vmatprep.subr.mxu0 0.0
    %635 = vmatpush1.msra.mxu0 0.0
    %636 = vmatprep.subr.mxu0 0.0
    %637 = vmatpush1.msra.mxu0 0.0
    %638 = vmatprep.subr.mxu0 0.0
    %639 = vmatpush1.msra.mxu0 0.0
    %640 = vmatprep.subr.mxu0 0.0
    %641 = vmatpush1.msra.mxu0 0.0
    %642 = vmatprep.subr.mxu0 0.0
    %643 = vmatpush1.msra.mxu0 0.0
    %644 = vmatprep.subr.mxu0 0.0
    %645 = vmatpush1.msra.mxu0 0.0
    %646 = vmatprep.subr.mxu0 0.0
    %647 = vmatpush1.msra.mxu0 0.0
    %648 = vmatprep.subr.mxu0 0.0
    %649 = vmatpush1.msra.mxu0 0.0
    %650 = vmatprep.subr.mxu0 0.0
    %651 = vmatpush1.msra.mxu0 %v615
    %652 = vmatprep.subr.mxu0 0.0
    %653 = vmatpush1.msra.mxu0 %v610
    %654 = vmatprep.subr.mxu0 0.0
    %655 = vmatpush2.msra.mxu0 0.0
    %656 = vmatprep.subr.mxu0 0.0
    %657 = vmatpush2.msra.mxu0 0.0
    %658 = vmatprep.subr.mxu0 0.0
    %659 = vmatpush2.msra.mxu0 0.0
    %660 = vmatprep.subr.mxu0 0.0
    %661 = vmatpush2.msra.mxu0 0.0
    %662 = vmatprep.subr.mxu0 0.0
    %663 = vmatpush2.msra.mxu0 0.0
    %664 = vmatprep.subr.mxu0 0.0
    %665 = vmatpush2.msra.mxu0 0.0
    %666 = vmatprep.subr.mxu0 0.0
    %667 = vmatpush2.msra.mxu0 0.0
    %668 = vmatprep.subr.mxu0 0.0
    %669 = vmatpush2.msra.mxu0 0.0
    %670 = vmatprep.subr.mxu0 0.0
    %671 = vmatpush2.msra.mxu0 0.0
    %672 = vmatprep.subr.mxu0 0.0
    %673 = vmatpush2.msra.mxu0 0.0
    %674 = vmatprep.subr.mxu0 0.0
    %675 = vmatpush2.msra.mxu0 0.0
    %676 = vmatprep.subr.mxu0 0.0
    %677 = vmatpush2.msra.mxu0 0.0
    %678 = vmatprep.subr.mxu0 0.0
    %679 = vmatpush2.msra.mxu0 0.0
    %680 = vmatprep.subr.mxu0 0.0
    %681 = vmatpush2.msra.mxu0 0.0
    %682 = vmatprep.subr.mxu0 0.0
    %683 = vmatpush2.msra.mxu0 0.0
    %684 = vmatprep.subr.mxu0 0.0
    %685 = vmatpush2.msra.mxu0 0.0
    %686 = vmatprep.mubr.f32.mxu0 0.0
    %687 = vmatmul.mubr.f32.gmra.mxu0 %v620
    %v688 = vpop.f32.mrf.mxu0
    %v689 = vadd.f32 0.0, %v688
    %v690 = vpop.f32.mrf.mxu0
    %691 = vdwg.mxu0
    %v692 = vmul.f32 %v689, 0.0625
    %v693 = vlaneseq
    %v694 = vshrl.u32 %v693, 7
    %v695 = vsub.s32 0, %v694
    %v696 = vrot.slane %v692, %v695
    %v697 = vsub.f32 %v610, %v696
    %v698 = vsub.f32 %v615, %v696
    %v699 = vmul.f32 %v697, %v697
    %v700 = vmul.f32 %v698, %v698
    %701 = vmatprep.subr.mxu0 0.0
    %702 = vmatpush1.msra.mxu0 0.0
    %703 = vmatprep.subr.mxu0 0.0
    %704 = vmatpush1.msra.mxu0 0.0
    %705 = vmatprep.subr.mxu0 0.0
    %706 = vmatpush1.msra.mxu0 0.0
    %707 = vmatprep.subr.mxu0 0.0
    %708 = vmatpush1.msra.mxu0 0.0
    %709 = vmatprep.subr.mxu0 0.0
    %710 = vmatpush1.msra.mxu0 0.0
    %711 = vmatprep.subr.mxu0 0.0
    %712 = vmatpush1.msra.mxu0 0.0
    %713 = vmatprep.subr.mxu0 0.0
    %714 = vmatpush1.msra.mxu0 0.0
    %715 = vmatprep.subr.mxu0 0.0
    %716 = vmatpush1.msra.mxu0 0.0
    %717 = vmatprep.subr.mxu0 0.0
    %718 = vmatpush1.msra.mxu0 0.0
    %719 = vmatprep.subr.mxu0 0.0
    %720 = vmatpush1.msra.mxu0 0.0
    %721 = vmatprep.subr.mxu0 0.0
    %722 = vmatpush1.msra.mxu0 0.0
    %723 = vmatprep.subr.mxu0 0.0
    %724 = vmatpush1.msra.mxu0 0.0
    %725 = vmatprep.subr.mxu0 0.0
    %726 = vmatpush1.msra.mxu0 0.0
    %727 = vmatprep.subr.mxu0 0.0
    %728 = vmatpush1.msra.mxu0 0.0
    %729 = vmatprep.subr.mxu0 0.0
    %730 = vmatpush1.msra.mxu0 %v700
    %731 = vmatprep.subr.mxu0 0.0
    %732 = vmatpush1.msra.mxu0 %v699
    %733 = vmatprep.subr.mxu0 0.0
    %734 = vmatpush2.msra.mxu0 0.0
    %735 = vmatprep.subr.mxu0 0.0
    %736 = vmatpush2.msra.mxu0 0.0
    %737 = vmatprep.subr.mxu0 0.0
    %738 = vmatpush2.msra.mxu0 0.0
    %739 = vmatprep.subr.mxu0 0.0
    %740 = vmatpush2.msra.mxu0 0.0
    %741 = vmatprep.subr.mxu0 0.0
    %742 = vmatpush2.msra.mxu0 0.0
    %743 = vmatprep.subr.mxu0 0.0
    %744 = vmatpush2.msra.mxu0 0.0
    %745 = vmatprep.subr.mxu0 0.0
    %746 = vmatpush2.msra.mxu0 0.0
    %747 = vmatprep.subr.mxu0 0.0
    %748 = vmatpush2.msra.mxu0 0.0
    %749 = vmatprep.subr.mxu0 0.0
    %750 = vmatpush2.msra.mxu0 0.0
    %751 = vmatprep.subr.mxu0 0.0
    %752 = vmatpush2.msra.mxu0 0.0
    %753 = vmatprep.subr.mxu0 0.0
    %754 = vmatpush2.msra.mxu0 0.0
    %755 = vmatprep.subr.mxu0 0.0
    %756 = vmatpush2.msra.mxu0 0.0
    %757 = vmatprep.subr.mxu0 0.0
    %758 = vmatpush2.msra.mxu0 0.0
    %759 = vmatprep.subr.mxu0 0.0
    %760 = vmatpush2.msra.mxu0 0.0
    %761 = vmatprep.subr.mxu0 0.0
    %762 = vmatpush2.msra.mxu0 0.0
    %763 = vmatprep.subr.mxu0 0.0
    %764 = vmatpush2.msra.mxu0 0.0
    %765 = vmatprep.mubr.f32.mxu0 0.0
    %766 = vmatmul.mubr.f32.gmra.mxu0 %v620
    %v767 = vpop.f32.mrf.mxu0
    %v768 = vadd.f32 0.0, %v767
    %v769 = vpop.f32.mrf.mxu0
    %770 = vdwg.mxu0
    %v771 = vmul.f32 %v768, 0.0625
    %v772 = vadd.f32 %v771, 1e-05
    %v773 = vrsqrt.pop %v772
    %v774 = vlaneseq
    %v775 = vshrl.u32 %v774, 7
    %v776 = vsub.s32 0, %v775
    %v777 = vrot.slane %v773, %v776
    %v778 = vmul.f32 %v697, %v777
    %v779 = vmul.f32 %v698, %v777
    %v781 = vlaneseq
    %v782 = vshrl.u32 %v781, 7
    %v783 = vsub.s32 0, %v782
    %v784 = vrot.slane %v618, %v783
    %v786 = vmul.f32 %v778, %v784
    %v787 = vmul.f32 %v779, %v784
    %v789 = vlaneseq
    %v790 = vshrl.u32 %v789, 7
    %v791 = vsub.s32 0, %v790
    %v792 = vrot.slane %v619, %v791
    %v794 = vadd.f32 %v786, %v792
    %v795 = vadd.f32 %v787, %v792
    %796 = vst [vmem:[#allocation28] sm:$0xff] %v520
    %797 = vst [vmem:[#allocation29] sm:$0xff] %v794
    %798 = vst [vmem:[#allocation29 + $0x8] sm:$0xff] %v795
    %v799 = vld [vmem:[%s2] sm:$0xff]
    %v801 = vsel %vm272, %v799, 0
    %803 = vmatprep.subr.mxu0 0.0
    %804 = vmatpush1.msra.mxu0 0.0
    %805 = vmatprep.subr.mxu0 0.0
    %806 = vmatpush1.msra.mxu0 0.0
    %807 = vmatprep.subr.mxu0 0.0
    %808 = vmatpush1.msra.mxu0 0.0
    %809 = vmatprep.subr.mxu0 0.0
    %810 = vmatpush1.msra.mxu0 0.0
    %811 = vmatprep.subr.mxu0 0.0
    %812 = vmatpush1.msra.mxu0 0.0
    %813 = vmatprep.subr.mxu0 0.0
    %814 = vmatpush1.msra.mxu0 0.0
    %815 = vmatprep.subr.mxu0 0.0
    %816 = vmatpush1.msra.mxu0 0.0
    %817 = vmatprep.subr.mxu0 0.0
    %818 = vmatpush1.msra.mxu0 0.0
    %819 = vmatprep.subr.mxu0 0.0
    %820 = vmatpush1.msra.mxu0 0.0
    %821 = vmatprep.subr.mxu0 0.0
    %822 = vmatpush1.msra.mxu0 0.0
    %823 = vmatprep.subr.mxu0 0.0
    %824 = vmatpush1.msra.mxu0 0.0
    %825 = vmatprep.subr.mxu0 0.0
    %826 = vmatpush1.msra.mxu0 0.0
    %827 = vmatprep.subr.mxu0 0.0
    %828 = vmatpush1.msra.mxu0 0.0
    %829 = vmatprep.subr.mxu0 0.0
    %830 = vmatpush1.msra.mxu0 0.0
    %831 = vmatprep.subr.mxu0 0.0
    %832 = vmatpush1.msra.mxu0 1.0
    %833 = vmatprep.subr.mxu0 0.0
    %834 = vmatpush1.msra.mxu0 1.0
    %835 = vmatprep.subr.mxu0 0.0
    %836 = vmatpush2.msra.mxu0 0.0
    %837 = vmatprep.subr.mxu0 0.0
    %838 = vmatpush2.msra.mxu0 0.0
    %839 = vmatprep.subr.mxu0 0.0
    %840 = vmatpush2.msra.mxu0 0.0
    %841 = vmatprep.subr.mxu0 0.0
    %842 = vmatpush2.msra.mxu0 0.0
    %843 = vmatprep.subr.mxu0 0.0
    %844 = vmatpush2.msra.mxu0 0.0
    %845 = vmatprep.subr.mxu0 0.0
    %846 = vmatpush2.msra.mxu0 0.0
    %847 = vmatprep.subr.mxu0 0.0
    %848 = vmatpush2.msra.mxu0 0.0
    %849 = vmatprep.subr.mxu0 0.0
    %850 = vmatpush2.msra.mxu0 0.0
    %851 = vmatprep.subr.mxu0 0.0
    %852 = vmatpush2.msra.mxu0 0.0
    %853 = vmatprep.subr.mxu0 0.0
    %854 = vmatpush2.msra.mxu0 0.0
    %855 = vmatprep.subr.mxu0 0.0
    %856 = vmatpush2.msra.mxu0 0.0
    %857 = vmatprep.subr.mxu0 0.0
    %858 = vmatpush2.msra.mxu0 0.0
    %859 = vmatprep.subr.mxu0 0.0
    %860 = vmatpush2.msra.mxu0 0.0
    %861 = vmatprep.subr.mxu0 0.0
    %862 = vmatpush2.msra.mxu0 0.0
    %863 = vmatprep.subr.mxu0 0.0
    %864 = vmatpush2.msra.mxu0 0.0
    %865 = vmatprep.subr.mxu0 0.0
    %866 = vmatpush2.msra.mxu0 0.0
    %867 = vmatprep.mubr.f32.mxu0 0.0
    %868 = vmatmul.mubr.f32.gmra.mxu0 %v801
    %v869 = vpop.f32.mrf.mxu0
    %v870 = vadd.f32 1.0, %v869
    %v871 = vpop.f32.mrf.mxu0
    %872 = vdwg.mxu0
    %v873 = vrcp.pop %v870
    %v874 = vmul.f32 %v870, %v873
    %v875 = vsub.f32 2.0, %v874
    %v876 = vmul.f32 %v873, %v875
    %877 = vxpose.xlu0.b32.start [1/16] %v799, 128
    %878 = vxpose.xlu0.b32.cont [2/16] 0.0, 128
    %879 = vxpose.xlu0.b32.cont [3/16] 0.0, 128
    %880 = vxpose.xlu0.b32.cont [4/16] 0.0, 128
    %881 = vxpose.xlu0.b32.cont [5/16] 0.0, 128
    %882 = vxpose.xlu0.b32.cont [6/16] 0.0, 128
    %883 = vxpose.xlu0.b32.cont [7/16] 0.0, 128
    %884 = vxpose.xlu0.b32.cont [8/16] 0.0, 128
    %885 = vxpose.xlu0.b32.cont [9/16] 0.0, 128
    %886 = vxpose.xlu0.b32.cont [10/16] 0.0, 128
    %887 = vxpose.xlu0.b32.cont [11/16] 0.0, 128
    %888 = vxpose.xlu0.b32.cont [12/16] 0.0, 128
    %889 = vxpose.xlu0.b32.cont [13/16] 0.0, 128
    %890 = vxpose.xlu0.b32.cont [14/16] 0.0, 128
    %891 = vxpose.xlu0.b32.cont [15/16] 0.0, 128
    %892 = vxpose.xlu0.b32.end [16/16] 0.0, 128
    %v893 = vpop.trf.xlu0
    %v894 = vpop.trf.xlu0
    %v895 = vpop.trf.xlu0
    %v896 = vpop.trf.xlu0
    %v897 = vpop.trf.xlu0
    %v898 = vpop.trf.xlu0
    %v899 = vpop.trf.xlu0
    %v900 = vpop.trf.xlu0
    %v901 = vpop.trf.xlu0
    %v902 = vpop.trf.xlu0
    %v903 = vpop.trf.xlu0
    %v904 = vpop.trf.xlu0
    %v905 = vpop.trf.xlu0
    %v906 = vpop.trf.xlu0
    %v907 = vpop.trf.xlu0
    %v908 = vpop.trf.xlu0
    %v910 = vsel %vm348, %v893, 0
    %v913 = vsel %vm348, %v894, 0
    %915 = vmatprep.subr.mxu0 0.0
    %916 = vmatpush1.msra.mxu0 0.0
    %917 = vmatprep.subr.mxu0 0.0
    %918 = vmatpush1.msra.mxu0 0.0
    %919 = vmatprep.subr.mxu0 0.0
    %920 = vmatpush1.msra.mxu0 0.0
    %921 = vmatprep.subr.mxu0 0.0
    %922 = vmatpush1.msra.mxu0 0.0
    %923 = vmatprep.subr.mxu0 0.0
    %924 = vmatpush1.msra.mxu0 0.0
    %925 = vmatprep.subr.mxu0 0.0
    %926 = vmatpush1.msra.mxu0 0.0
    %927 = vmatprep.subr.mxu0 0.0
    %928 = vmatpush1.msra.mxu0 0.0
    %929 = vmatprep.subr.mxu0 0.0
    %930 = vmatpush1.msra.mxu0 0.0
    %931 = vmatprep.subr.mxu0 0.0
    %932 = vmatpush1.msra.mxu0 0.0
    %933 = vmatprep.subr.mxu0 0.0
    %934 = vmatpush1.msra.mxu0 0.0
    %935 = vmatprep.subr.mxu0 0.0
    %936 = vmatpush1.msra.mxu0 0.0
    %937 = vmatprep.subr.mxu0 0.0
    %938 = vmatpush1.msra.mxu0 0.0
    %939 = vmatprep.subr.mxu0 0.0
    %940 = vmatpush1.msra.mxu0 0.0
    %941 = vmatprep.subr.mxu0 0.0
    %942 = vmatpush1.msra.mxu0 0.0
    %943 = vmatprep.subr.mxu0 0.0
    %944 = vmatpush1.msra.mxu0 0.0
    %945 = vmatprep.subr.mxu0 0.0
    %946 = vmatpush1.msra.mxu0 1.0
    %947 = vmatprep.subr.mxu0 0.0
    %948 = vmatpush2.msra.mxu0 0.0
    %949 = vmatprep.subr.mxu0 0.0
    %950 = vmatpush2.msra.mxu0 0.0
    %951 = vmatprep.subr.mxu0 0.0
    %952 = vmatpush2.msra.mxu0 0.0
    %953 = vmatprep.subr.mxu0 0.0
    %954 = vmatpush2.msra.mxu0 0.0
    %955 = vmatprep.subr.mxu0 0.0
    %956 = vmatpush2.msra.mxu0 0.0
    %957 = vmatprep.subr.mxu0 0.0
    %958 = vmatpush2.msra.mxu0 0.0
    %959 = vmatprep.subr.mxu0 0.0
    %960 = vmatpush2.msra.mxu0 0.0
    %961 = vmatprep.subr.mxu0 0.0
    %962 = vmatpush2.msra.mxu0 0.0
    %963 = vmatprep.subr.mxu0 0.0
    %964 = vmatpush2.msra.mxu0 0.0
    %965 = vmatprep.subr.mxu0 0.0
    %966 = vmatpush2.msra.mxu0 0.0
    %967 = vmatprep.subr.mxu0 0.0
    %968 = vmatpush2.msra.mxu0 0.0
    %969 = vmatprep.subr.mxu0 0.0
    %970 = vmatpush2.msra.mxu0 0.0
    %971 = vmatprep.subr.mxu0 0.0
    %972 = vmatpush2.msra.mxu0 0.0
    %973 = vmatprep.subr.mxu0 0.0
    %974 = vmatpush2.msra.mxu0 0.0
    %975 = vmatprep.subr.mxu0 0.0
    %976 = vmatpush2.msra.mxu0 0.0
    %977 = vmatprep.subr.mxu0 0.0
    %978 = vmatpush2.msra.mxu0 0.0
    %979 = vmatprep.mubr.f32.mxu0 0.0
    %980 = vmatmul.mubr.f32.gmra.mxu0 %v910
    %v981 = vpop.f32.mrf.mxu0
    %v982 = vadd.f32 1.0, %v981
    %v983 = vpop.f32.mrf.mxu0
    %984 = vmatprep.mubr.f32.mxu0 0.0
    %985 = vmatmul.mubr.f32.gmra.mxu0 %v913
    %v986 = vpop.f32.mrf.mxu0
    %v987 = vadd.f32 1.0, %v986
    %v988 = vpop.f32.mrf.mxu0
    %989 = vdwg.mxu0
    %v990 = vrcp.pop %v982
    %v991 = vrcp.pop %v987
    %v992 = vmul.f32 %v982, %v990
    %v993 = vmul.f32 %v987, %v991
    %v994 = vsub.f32 2.0, %v992
    %v995 = vsub.f32 2.0, %v993
    %v996 = vmul.f32 %v990, %v994
    %v997 = vmul.f32 %v991, %v995
    %998 = vmatprep.subr.mxu0 0.0
    %999 = vmatpush1.msra.mxu0 0.0
    %1000 = vmatprep.subr.mxu0 0.0
    %1001 = vmatpush1.msra.mxu0 0.0
    %1002 = vmatprep.subr.mxu0 0.0
    %1003 = vmatpush1.msra.mxu0 0.0
    %1004 = vmatprep.subr.mxu0 0.0
    %1005 = vmatpush1.msra.mxu0 0.0
    %1006 = vmatprep.subr.mxu0 0.0
    %1007 = vmatpush1.msra.mxu0 0.0
    %1008 = vmatprep.subr.mxu0 0.0
    %1009 = vmatpush1.msra.mxu0 0.0
    %1010 = vmatprep.subr.mxu0 0.0
    %1011 = vmatpush1.msra.mxu0 0.0
    %1012 = vmatprep.subr.mxu0 0.0
    %1013 = vmatpush1.msra.mxu0 0.0
    %1014 = vmatprep.subr.mxu0 0.0
    %1015 = vmatpush1.msra.mxu0 0.0
    %1016 = vmatprep.subr.mxu0 0.0
    %1017 = vmatpush1.msra.mxu0 0.0
    %1018 = vmatprep.subr.mxu0 0.0
    %1019 = vmatpush1.msra.mxu0 0.0
    %1020 = vmatprep.subr.mxu0 0.0
    %1021 = vmatpush1.msra.mxu0 0.0
    %1022 = vmatprep.subr.mxu0 0.0
    %1023 = vmatpush1.msra.mxu0 0.0
    %1024 = vmatprep.subr.mxu0 0.0
    %1025 = vmatpush1.msra.mxu0 0.0
    %1026 = vmatprep.subr.mxu0 0.0
    %1027 = vmatpush1.msra.mxu0 %v795
    %1028 = vmatprep.subr.mxu0 0.0
    %1029 = vmatpush1.msra.mxu0 %v794
    %1030 = vmatprep.subr.mxu0 0.0
    %1031 = vmatpush2.msra.mxu0 0.0
    %1032 = vmatprep.subr.mxu0 0.0
    %1033 = vmatpush2.msra.mxu0 0.0
    %1034 = vmatprep.subr.mxu0 0.0
    %1035 = vmatpush2.msra.mxu0 0.0
    %1036 = vmatprep.subr.mxu0 0.0
    %1037 = vmatpush2.msra.mxu0 0.0
    %1038 = vmatprep.subr.mxu0 0.0
    %1039 = vmatpush2.msra.mxu0 0.0
    %1040 = vmatprep.subr.mxu0 0.0
    %1041 = vmatpush2.msra.mxu0 0.0
    %1042 = vmatprep.subr.mxu0 0.0
    %1043 = vmatpush2.msra.mxu0 0.0
    %1044 = vmatprep.subr.mxu0 0.0
    %1045 = vmatpush2.msra.mxu0 0.0
    %1046 = vmatprep.subr.mxu0 0.0
    %1047 = vmatpush2.msra.mxu0 0.0
    %1048 = vmatprep.subr.mxu0 0.0
    %1049 = vmatpush2.msra.mxu0 0.0
    %1050 = vmatprep.subr.mxu0 0.0
    %1051 = vmatpush2.msra.mxu0 0.0
    %1052 = vmatprep.subr.mxu0 0.0
    %1053 = vmatpush2.msra.mxu0 0.0
    %1054 = vmatprep.subr.mxu0 0.0
    %1055 = vmatpush2.msra.mxu0 0.0
    %1056 = vmatprep.subr.mxu0 0.0
    %1057 = vmatpush2.msra.mxu0 0.0
    %1058 = vmatprep.subr.mxu0 0.0
    %1059 = vmatpush2.msra.mxu0 0.0
    %1060 = vmatprep.subr.mxu0 0.0
    %1061 = vmatpush2.msra.mxu0 0.0
    %1062 = vmatprep.mubr.f32.mxu0 0.0
    %1063 = vmatmul.mubr.f32.gmra.mxu0 %v801
    %v1064 = vpop.f32.mrf.mxu0
    %v1065 = vadd.f32 0.0, %v1064
    %v1066 = vpop.f32.mrf.mxu0
    %1067 = vdwg.mxu0
    %1068 = vmatprep.subr.mxu0 0.0
    %1069 = vmatpush1.msra.mxu0 0.0
    %1070 = vmatprep.subr.mxu0 0.0
    %1071 = vmatpush1.msra.mxu0 0.0
    %1072 = vmatprep.subr.mxu0 0.0
    %1073 = vmatpush1.msra.mxu0 0.0
    %1074 = vmatprep.subr.mxu0 0.0
    %1075 = vmatpush1.msra.mxu0 0.0
    %1076 = vmatprep.subr.mxu0 0.0
    %1077 = vmatpush1.msra.mxu0 0.0
    %1078 = vmatprep.subr.mxu0 0.0
    %1079 = vmatpush1.msra.mxu0 0.0
    %1080 = vmatprep.subr.mxu0 0.0
    %1081 = vmatpush1.msra.mxu0 0.0
    %1082 = vmatprep.subr.mxu0 0.0
    %1083 = vmatpush1.msra.mxu0 0.0
    %1084 = vmatprep.subr.mxu0 0.0
    %1085 = vmatpush1.msra.mxu0 0.0
    %1086 = vmatprep.subr.mxu0 0.0
    %1087 = vmatpush1.msra.mxu0 0.0
    %1088 = vmatprep.subr.mxu0 0.0
    %1089 = vmatpush1.msra.mxu0 0.0
    %1090 = vmatprep.subr.mxu0 0.0
    %1091 = vmatpush1.msra.mxu0 0.0
    %1092 = vmatprep.subr.mxu0 0.0
    %1093 = vmatpush1.msra.mxu0 0.0
    %1094 = vmatprep.subr.mxu0 0.0
    %1095 = vmatpush1.msra.mxu0 0.0
    %1096 = vmatprep.subr.mxu0 0.0
    %1097 = vmatpush1.msra.mxu0 0.0
    %1098 = vmatprep.subr.mxu0 0.0
    %1099 = vmatpush1.msra.mxu0 %v520
    %1100 = vmatprep.subr.mxu0 0.0
    %1101 = vmatpush2.msra.mxu0 0.0
    %1102 = vmatprep.subr.mxu0 0.0
    %1103 = vmatpush2.msra.mxu0 0.0
    %1104 = vmatprep.subr.mxu0 0.0
    %1105 = vmatpush2.msra.mxu0 0.0
    %1106 = vmatprep.subr.mxu0 0.0
    %1107 = vmatpush2.msra.mxu0 0.0
    %1108 = vmatprep.subr.mxu0 0.0
    %1109 = vmatpush2.msra.mxu0 0.0
    %1110 = vmatprep.subr.mxu0 0.0
    %1111 = vmatpush2.msra.mxu0 0.0
    %1112 = vmatprep.subr.mxu0 0.0
    %1113 = vmatpush2.msra.mxu0 0.0
    %1114 = vmatprep.subr.mxu0 0.0
    %1115 = vmatpush2.msra.mxu0 0.0
    %1116 = vmatprep.subr.mxu0 0.0
    %1117 = vmatpush2.msra.mxu0 0.0
    %1118 = vmatprep.subr.mxu0 0.0
    %1119 = vmatpush2.msra.mxu0 0.0
    %1120 = vmatprep.subr.mxu0 0.0
    %1121 = vmatpush2.msra.mxu0 0.0
    %1122 = vmatprep.subr.mxu0 0.0
    %1123 = vmatpush2.msra.mxu0 0.0
    %1124 = vmatprep.subr.mxu0 0.0
    %1125 = vmatpush2.msra.mxu0 0.0
    %1126 = vmatprep.subr.mxu0 0.0
    %1127 = vmatpush2.msra.mxu0 0.0
    %1128 = vmatprep.subr.mxu0 0.0
    %1129 = vmatpush2.msra.mxu0 0.0
    %1130 = vmatprep.subr.mxu0 0.0
    %1131 = vmatpush2.msra.mxu0 0.0
    %1132 = vmatprep.mubr.f32.mxu0 0.0
    %1133 = vmatmul.mubr.f32.gmra.mxu0 %v910
    %v1134 = vpop.f32.mrf.mxu0
    %v1135 = vadd.f32 0.0, %v1134
    %v1136 = vpop.f32.mrf.mxu0
    %1137 = vmatprep.mubr.f32.mxu0 0.0
    %1138 = vmatmul.mubr.f32.gmra.mxu0 %v913
    %v1139 = vpop.f32.mrf.mxu0
    %v1140 = vadd.f32 0.0, %v1139
    %v1141 = vpop.f32.mrf.mxu0
    %1142 = vdwg.mxu0
    %v1143 = vadd.f32 %v520, %v1065
    %v1144 = vmul.f32 %v1143, %v876
    %v1145 = vadd.f32 %v794, %v1135
    %v1146 = vadd.f32 %v795, %v1140
    %v1147 = vmul.f32 %v1145, %v996
    %v1148 = vmul.f32 %v1146, %v997
    %v1149 = vld [vmem:[#allocation16] sm:$0xff]
    %v1150 = vld [vmem:[#allocation16 + $0x8] sm:$0xff]
    %v1151 = vld [vmem:[#allocation16 + $0x10] sm:$0xff]
    %v1152 = vld [vmem:[#allocation16 + $0x18] sm:$0xff]
    %v1153 = vld [vmem:[#allocation16 + $0x20] sm:$0xff]
    %v1154 = vld [vmem:[#allocation16 + $0x28] sm:$0xff]
    %v1155 = vld [vmem:[#allocation16 + $0x30] sm:$0xff]
    %v1156 = vld [vmem:[#allocation16 + $0x38] sm:$0xff]
    %v1157 = vld [vmem:[#allocation16 + $0x40] sm:$0xff]
    %v1158 = vld [vmem:[#allocation16 + $0x48] sm:$0xff]
    %v1159 = vld [vmem:[#allocation16 + $0x50] sm:$0xff]
    %v1160 = vld [vmem:[#allocation16 + $0x58] sm:$0xff]
    %v1161 = vld [vmem:[#allocation16 + $0x60] sm:$0xff]
    %v1162 = vld [vmem:[#allocation16 + $0x68] sm:$0xff]
    %v1163 = vld [vmem:[#allocation16 + $0x70] sm:$0xff]
    %v1164 = vld [vmem:[#allocation16 + $0x78] sm:$0xff]
    %v1165 = vld [vmem:[#allocation17] sm:$0x1]
    %v1167 = vlaneseq
    %v1168 = vshrl.u32 %v1167, 7
    %v1169 = vsub.s32 0, %v1168
    %v1170 = vrot.slane %v1165, %v1169
    %1172 = vmatprep.subr.mxu0 0.0
    %1173 = vmatpush1.msra.mxu0 %v1164
    %1174 = vmatprep.subr.mxu0 0.0
    %1175 = vmatpush1.msra.mxu0 %v1163
    %1176 = vmatprep.subr.mxu0 0.0
    %1177 = vmatpush1.msra.mxu0 %v1162
    %1178 = vmatprep.subr.mxu0 0.0
    %1179 = vmatpush1.msra.mxu0 %v1161
    %1180 = vmatprep.subr.mxu0 0.0
    %1181 = vmatpush1.msra.mxu0 %v1160
    %1182 = vmatprep.subr.mxu0 0.0
    %1183 = vmatpush1.msra.mxu0 %v1159
    %1184 = vmatprep.subr.mxu0 0.0
    %1185 = vmatpush1.msra.mxu0 %v1158
    %1186 = vmatprep.subr.mxu0 0.0
    %1187 = vmatpush1.msra.mxu0 %v1157
    %1188 = vmatprep.subr.mxu0 0.0
    %1189 = vmatpush1.msra.mxu0 %v1156
    %1190 = vmatprep.subr.mxu0 0.0
    %1191 = vmatpush1.msra.mxu0 %v1155
    %1192 = vmatprep.subr.mxu0 0.0
    %1193 = vmatpush1.msra.mxu0 %v1154
    %1194 = vmatprep.subr.mxu0 0.0
    %1195 = vmatpush1.msra.mxu0 %v1153
    %1196 = vmatprep.subr.mxu0 0.0
    %1197 = vmatpush1.msra.mxu0 %v1152
    %1198 = vmatprep.subr.mxu0 0.0
    %1199 = vmatpush1.msra.mxu0 %v1151
    %1200 = vmatprep.subr.mxu0 0.0
    %1201 = vmatpush1.msra.mxu0 %v1150
    %1202 = vmatprep.subr.mxu0 0.0
    %1203 = vmatpush1.msra.mxu0 %v1149
    %1204 = vmatprep.subr.mxu0 0.0
    %1205 = vmatpush2.msra.mxu0 0.0
    %1206 = vmatprep.subr.mxu0 0.0
    %1207 = vmatpush2.msra.mxu0 0.0
    %1208 = vmatprep.subr.mxu0 0.0
    %1209 = vmatpush2.msra.mxu0 0.0
    %1210 = vmatprep.subr.mxu0 0.0
    %1211 = vmatpush2.msra.mxu0 0.0
    %1212 = vmatprep.subr.mxu0 0.0
    %1213 = vmatpush2.msra.mxu0 0.0
    %1214 = vmatprep.subr.mxu0 0.0
    %1215 = vmatpush2.msra.mxu0 0.0
    %1216 = vmatprep.subr.mxu0 0.0
    %1217 = vmatpush2.msra.mxu0 0.0
    %1218 = vmatprep.subr.mxu0 0.0
    %1219 = vmatpush2.msra.mxu0 0.0
    %1220 = vmatprep.subr.mxu0 0.0
    %1221 = vmatpush2.msra.mxu0 0.0
    %1222 = vmatprep.subr.mxu0 0.0
    %1223 = vmatpush2.msra.mxu0 0.0
    %1224 = vmatprep.subr.mxu0 0.0
    %1225 = vmatpush2.msra.mxu0 0.0
    %1226 = vmatprep.subr.mxu0 0.0
    %1227 = vmatpush2.msra.mxu0 0.0
    %1228 = vmatprep.subr.mxu0 0.0
    %1229 = vmatpush2.msra.mxu0 0.0
    %1230 = vmatprep.subr.mxu0 0.0
    %1231 = vmatpush2.msra.mxu0 0.0
    %1232 = vmatprep.subr.mxu0 0.0
    %1233 = vmatpush2.msra.mxu0 0.0
    %1234 = vmatprep.subr.mxu0 0.0
    %1235 = vmatpush2.msra.mxu0 0.0
    %1236 = vmatprep.mubr.f32.mxu0 0.0
    %1237 = vmatmul.mubr.f32.gmra.mxu0 %v1144
    %v1238 = vpop.f32.mrf.mxu0
    %v1239 = vadd.f32 %v1170, %v1238
    %v1240 = vpop.f32.mrf.mxu0
    %1241 = vdwg.mxu0
    %v1242 = vld [vmem:[#allocation19] sm:$0x1]
    %v1243 = vld [vmem:[#allocation20] sm:$0x1]
    %1244 = vmatprep.subr.mxu0 0.0
    %1245 = vmatpush1.msra.mxu0 0.0
    %1246 = vmatprep.subr.mxu0 0.0
    %1247 = vmatpush1.msra.mxu0 0.0
    %1248 = vmatprep.subr.mxu0 0.0
    %1249 = vmatpush1.msra.mxu0 0.0
    %1250 = vmatprep.subr.mxu0 0.0
    %1251 = vmatpush1.msra.mxu0 0.0
    %1252 = vmatprep.subr.mxu0 0.0
    %1253 = vmatpush1.msra.mxu0 0.0
    %1254 = vmatprep.subr.mxu0 0.0
    %1255 = vmatpush1.msra.mxu0 0.0
    %1256 = vmatprep.subr.mxu0 0.0
    %1257 = vmatpush1.msra.mxu0 0.0
    %1258 = vmatprep.subr.mxu0 0.0
    %1259 = vmatpush1.msra.mxu0 0.0
    %1260 = vmatprep.subr.mxu0 0.0
    %1261 = vmatpush1.msra.mxu0 0.0
    %1262 = vmatprep.subr.mxu0 0.0
    %1263 = vmatpush1.msra.mxu0 0.0
    %1264 = vmatprep.subr.mxu0 0.0
    %1265 = vmatpush1.msra.mxu0 0.0
    %1266 = vmatprep.subr.mxu0 0.0
    %1267 = vmatpush1.msra.mxu0 0.0
    %1268 = vmatprep.subr.mxu0 0.0
    %1269 = vmatpush1.msra.mxu0 0.0
    %1270 = vmatprep.subr.mxu0 0.0
    %1271 = vmatpush1.msra.mxu0 0.0
    %1272 = vmatprep.subr.mxu0 0.0
    %1273 = vmatpush1.msra.mxu0 0.0
    %1274 = vmatprep.subr.mxu0 0.0
    %1275 = vmatpush1.msra.mxu0 %v1239
    %1276 = vmatprep.subr.mxu0 0.0
    %1277 = vmatpush2.msra.mxu0 0.0
    %1278 = vmatprep.subr.mxu0 0.0
    %1279 = vmatpush2.msra.mxu0 0.0
    %1280 = vmatprep.subr.mxu0 0.0
    %1281 = vmatpush2.msra.mxu0 0.0
    %1282 = vmatprep.subr.mxu0 0.0
    %1283 = vmatpush2.msra.mxu0 0.0
    %1284 = vmatprep.subr.mxu0 0.0
    %1285 = vmatpush2.msra.mxu0 0.0
    %1286 = vmatprep.subr.mxu0 0.0
    %1287 = vmatpush2.msra.mxu0 0.0
    %1288 = vmatprep.subr.mxu0 0.0
    %1289 = vmatpush2.msra.mxu0 0.0
    %1290 = vmatprep.subr.mxu0 0.0
    %1291 = vmatpush2.msra.mxu0 0.0
    %1292 = vmatprep.subr.mxu0 0.0
    %1293 = vmatpush2.msra.mxu0 0.0
    %1294 = vmatprep.subr.mxu0 0.0
    %1295 = vmatpush2.msra.mxu0 0.0
    %1296 = vmatprep.subr.mxu0 0.0
    %1297 = vmatpush2.msra.mxu0 0.0
    %1298 = vmatprep.subr.mxu0 0.0
    %1299 = vmatpush2.msra.mxu0 0.0
    %1300 = vmatprep.subr.mxu0 0.0
    %1301 = vmatpush2.msra.mxu0 0.0
    %1302 = vmatprep.subr.mxu0 0.0
    %1303 = vmatpush2.msra.mxu0 0.0
    %1304 = vmatprep.subr.mxu0 0.0
    %1305 = vmatpush2.msra.mxu0 0.0
    %1306 = vmatprep.subr.mxu0 0.0
    %1307 = vmatpush2.msra.mxu0 0.0
    %1308 = vmatprep.mubr.f32.mxu0 0.0
    %1309 = vmatmul.mubr.f32.gmra.mxu0 %v350
    %v1310 = vpop.f32.mrf.mxu0
    %v1311 = vadd.f32 0.0, %v1310
    %v1312 = vpop.f32.mrf.mxu0
    %1313 = vdwg.mxu0
    %v1314 = vmul.f32 %v1311, 0.125
    %v1315 = vlaneseq
    %v1316 = vshrl.u32 %v1315, 7
    %v1317 = vsub.s32 0, %v1316
    %v1318 = vrot.slane %v1314, %v1317
    %v1319 = vsub.f32 %v1239, %v1318
    %v1320 = vmul.f32 %v1319, %v1319
    %1321 = vmatprep.subr.mxu0 0.0
    %1322 = vmatpush1.msra.mxu0 0.0
    %1323 = vmatprep.subr.mxu0 0.0
    %1324 = vmatpush1.msra.mxu0 0.0
    %1325 = vmatprep.subr.mxu0 0.0
    %1326 = vmatpush1.msra.mxu0 0.0
    %1327 = vmatprep.subr.mxu0 0.0
    %1328 = vmatpush1.msra.mxu0 0.0
    %1329 = vmatprep.subr.mxu0 0.0
    %1330 = vmatpush1.msra.mxu0 0.0
    %1331 = vmatprep.subr.mxu0 0.0
    %1332 = vmatpush1.msra.mxu0 0.0
    %1333 = vmatprep.subr.mxu0 0.0
    %1334 = vmatpush1.msra.mxu0 0.0
    %1335 = vmatprep.subr.mxu0 0.0
    %1336 = vmatpush1.msra.mxu0 0.0
    %1337 = vmatprep.subr.mxu0 0.0
    %1338 = vmatpush1.msra.mxu0 0.0
    %1339 = vmatprep.subr.mxu0 0.0
    %1340 = vmatpush1.msra.mxu0 0.0
    %1341 = vmatprep.subr.mxu0 0.0
    %1342 = vmatpush1.msra.mxu0 0.0
    %1343 = vmatprep.subr.mxu0 0.0
    %1344 = vmatpush1.msra.mxu0 0.0
    %1345 = vmatprep.subr.mxu0 0.0
    %1346 = vmatpush1.msra.mxu0 0.0
    %1347 = vmatprep.subr.mxu0 0.0
    %1348 = vmatpush1.msra.mxu0 0.0
    %1349 = vmatprep.subr.mxu0 0.0
    %1350 = vmatpush1.msra.mxu0 0.0
    %1351 = vmatprep.subr.mxu0 0.0
    %1352 = vmatpush1.msra.mxu0 %v1320
    %1353 = vmatprep.subr.mxu0 0.0
    %1354 = vmatpush2.msra.mxu0 0.0
    %1355 = vmatprep.subr.mxu0 0.0
    %1356 = vmatpush2.msra.mxu0 0.0
    %1357 = vmatprep.subr.mxu0 0.0
    %1358 = vmatpush2.msra.mxu0 0.0
    %1359 = vmatprep.subr.mxu0 0.0
    %1360 = vmatpush2.msra.mxu0 0.0
    %1361 = vmatprep.subr.mxu0 0.0
    %1362 = vmatpush2.msra.mxu0 0.0
    %1363 = vmatprep.subr.mxu0 0.0
    %1364 = vmatpush2.msra.mxu0 0.0
    %1365 = vmatprep.subr.mxu0 0.0
    %1366 = vmatpush2.msra.mxu0 0.0
    %1367 = vmatprep.subr.mxu0 0.0
    %1368 = vmatpush2.msra.mxu0 0.0
    %1369 = vmatprep.subr.mxu0 0.0
    %1370 = vmatpush2.msra.mxu0 0.0
    %1371 = vmatprep.subr.mxu0 0.0
    %1372 = vmatpush2.msra.mxu0 0.0
    %1373 = vmatprep.subr.mxu0 0.0
    %1374 = vmatpush2.msra.mxu0 0.0
    %1375 = vmatprep.subr.mxu0 0.0
    %1376 = vmatpush2.msra.mxu0 0.0
    %1377 = vmatprep.subr.mxu0 0.0
    %1378 = vmatpush2.msra.mxu0 0.0
    %1379 = vmatprep.subr.mxu0 0.0
    %1380 = vmatpush2.msra.mxu0 0.0
    %1381 = vmatprep.subr.mxu0 0.0
    %1382 = vmatpush2.msra.mxu0 0.0
    %1383 = vmatprep.subr.mxu0 0.0
    %1384 = vmatpush2.msra.mxu0 0.0
    %1385 = vmatprep.mubr.f32.mxu0 0.0
    %1386 = vmatmul.mubr.f32.gmra.mxu0 %v350
    %v1387 = vpop.f32.mrf.mxu0
    %v1388 = vadd.f32 0.0, %v1387
    %v1389 = vpop.f32.mrf.mxu0
    %1390 = vdwg.mxu0
    %v1391 = vmul.f32 %v1388, 0.125
    %v1392 = vadd.f32 %v1391, 1e-05
    %v1393 = vrsqrt.pop %v1392
    %v1394 = vlaneseq
    %v1395 = vshrl.u32 %v1394, 7
    %v1396 = vsub.s32 0, %v1395
    %v1397 = vrot.slane %v1393, %v1396
    %v1398 = vmul.f32 %v1319, %v1397
    %v1400 = vlaneseq
    %v1401 = vshrl.u32 %v1400, 7
    %v1402 = vsub.s32 0, %v1401
    %v1403 = vrot.slane %v1242, %v1402
    %v1405 = vmul.f32 %v1398, %v1403
    %v1407 = vlaneseq
    %v1408 = vshrl.u32 %v1407, 7
    %v1409 = vsub.s32 0, %v1408
    %v1410 = vrot.slane %v1243, %v1409
    %v1412 = vadd.f32 %v1405, %v1410
    %1413 = vst [vmem:[#allocation31] sm:$0xff] %v1412
    %v1414 = vld [vmem:[#allocation22] sm:$0xff]
    %v1415 = vld [vmem:[#allocation22 + $0x8] sm:$0xff]
    %v1416 = vld [vmem:[#allocation22 + $0x10] sm:$0xff]
    %v1417 = vld [vmem:[#allocation22 + $0x18] sm:$0xff]
    %v1418 = vld [vmem:[#allocation22 + $0x20] sm:$0xff]
    %v1419 = vld [vmem:[#allocation22 + $0x28] sm:$0xff]
    %v1420 = vld [vmem:[#allocation22 + $0x30] sm:$0xff]
    %v1421 = vld [vmem:[#allocation22 + $0x38] sm:$0xff]
    %v1422 = vld [vmem:[#allocation22 + $0x40] sm:$0xff]
    %v1423 = vld [vmem:[#allocation22 + $0x48] sm:$0xff]
    %v1424 = vld [vmem:[#allocation22 + $0x50] sm:$0xff]
    %v1425 = vld [vmem:[#allocation22 + $0x58] sm:$0xff]
    %v1426 = vld [vmem:[#allocation22 + $0x60] sm:$0xff]
    %v1427 = vld [vmem:[#allocation22 + $0x68] sm:$0xff]
    %v1428 = vld [vmem:[#allocation22 + $0x70] sm:$0xff]
    %v1429 = vld [vmem:[#allocation22 + $0x78] sm:$0xff]
    %v1430 = vld [vmem:[#allocation23] sm:$0x1]
    %v1432 = vlaneseq
    %v1433 = vshrl.u32 %v1432, 7
    %v1434 = vsub.s32 0, %v1433
    %v1435 = vrot.slane %v1430, %v1434
    %1437 = vmatprep.subr.mxu0 0.0
    %1438 = vmatpush1.msra.mxu0 %v1429
    %1439 = vmatprep.subr.mxu0 0.0
    %1440 = vmatpush1.msra.mxu0 %v1428
    %1441 = vmatprep.subr.mxu0 0.0
    %1442 = vmatpush1.msra.mxu0 %v1427
    %1443 = vmatprep.subr.mxu0 0.0
    %1444 = vmatpush1.msra.mxu0 %v1426
    %1445 = vmatprep.subr.mxu0 0.0
    %1446 = vmatpush1.msra.mxu0 %v1425
    %1447 = vmatprep.subr.mxu0 0.0
    %1448 = vmatpush1.msra.mxu0 %v1424
    %1449 = vmatprep.subr.mxu0 0.0
    %1450 = vmatpush1.msra.mxu0 %v1423
    %1451 = vmatprep.subr.mxu0 0.0
    %1452 = vmatpush1.msra.mxu0 %v1422
    %1453 = vmatprep.subr.mxu0 0.0
    %1454 = vmatpush1.msra.mxu0 %v1421
    %1455 = vmatprep.subr.mxu0 0.0
    %1456 = vmatpush1.msra.mxu0 %v1420
    %1457 = vmatprep.subr.mxu0 0.0
    %1458 = vmatpush1.msra.mxu0 %v1419
    %1459 = vmatprep.subr.mxu0 0.0
    %1460 = vmatpush1.msra.mxu0 %v1418
    %1461 = vmatprep.subr.mxu0 0.0
    %1462 = vmatpush1.msra.mxu0 %v1417
    %1463 = vmatprep.subr.mxu0 0.0
    %1464 = vmatpush1.msra.mxu0 %v1416
    %1465 = vmatprep.subr.mxu0 0.0
    %1466 = vmatpush1.msra.mxu0 %v1415
    %1467 = vmatprep.subr.mxu0 0.0
    %1468 = vmatpush1.msra.mxu0 %v1414
    %1469 = vmatprep.subr.mxu0 0.0
    %1470 = vmatpush2.msra.mxu0 0.0
    %1471 = vmatprep.subr.mxu0 0.0
    %1472 = vmatpush2.msra.mxu0 0.0
    %1473 = vmatprep.subr.mxu0 0.0
    %1474 = vmatpush2.msra.mxu0 0.0
    %1475 = vmatprep.subr.mxu0 0.0
    %1476 = vmatpush2.msra.mxu0 0.0
    %1477 = vmatprep.subr.mxu0 0.0
    %1478 = vmatpush2.msra.mxu0 0.0
    %1479 = vmatprep.subr.mxu0 0.0
    %1480 = vmatpush2.msra.mxu0 0.0
    %1481 = vmatprep.subr.mxu0 0.0
    %1482 = vmatpush2.msra.mxu0 0.0
    %1483 = vmatprep.subr.mxu0 0.0
    %1484 = vmatpush2.msra.mxu0 0.0
    %1485 = vmatprep.subr.mxu0 0.0
    %1486 = vmatpush2.msra.mxu0 0.0
    %1487 = vmatprep.subr.mxu0 0.0
    %1488 = vmatpush2.msra.mxu0 0.0
    %1489 = vmatprep.subr.mxu0 0.0
    %1490 = vmatpush2.msra.mxu0 0.0
    %1491 = vmatprep.subr.mxu0 0.0
    %1492 = vmatpush2.msra.mxu0 0.0
    %1493 = vmatprep.subr.mxu0 0.0
    %1494 = vmatpush2.msra.mxu0 0.0
    %1495 = vmatprep.subr.mxu0 0.0
    %1496 = vmatpush2.msra.mxu0 0.0
    %1497 = vmatprep.subr.mxu0 0.0
    %1498 = vmatpush2.msra.mxu0 0.0
    %1499 = vmatprep.subr.mxu0 0.0
    %1500 = vmatpush2.msra.mxu0 0.0
    %1501 = vmatprep.mubr.f32.mxu0 0.0
    %1502 = vmatmul.mubr.f32.gmra.mxu0 %v1147
    %v1503 = vpop.f32.mrf.mxu0
    %v1504 = vadd.f32 %v1435, %v1503
    %v1505 = vpop.f32.mrf.mxu0
    %1506 = vmatprep.mubr.f32.mxu0 0.0
    %1507 = vmatmul.mubr.f32.gmra.mxu0 %v1148
    %v1508 = vpop.f32.mrf.mxu0
    %v1509 = vadd.f32 %v1435, %v1508
    %v1510 = vpop.f32.mrf.mxu0
    %1511 = vdwg.mxu0
    %v1512 = vld [vmem:[#allocation25] sm:$0x1]
    %v1513 = vld [vmem:[#allocation26] sm:$0x1]
    %1514 = vmatprep.subr.mxu0 0.0
    %1515 = vmatpush1.msra.mxu0 0.0
    %1516 = vmatprep.subr.mxu0 0.0
    %1517 = vmatpush1.msra.mxu0 0.0
    %1518 = vmatprep.subr.mxu0 0.0
    %1519 = vmatpush1.msra.mxu0 0.0
    %1520 = vmatprep.subr.mxu0 0.0
    %1521 = vmatpush1.msra.mxu0 0.0
    %1522 = vmatprep.subr.mxu0 0.0
    %1523 = vmatpush1.msra.mxu0 0.0
    %1524 = vmatprep.subr.mxu0 0.0
    %1525 = vmatpush1.msra.mxu0 0.0
    %1526 = vmatprep.subr.mxu0 0.0
    %1527 = vmatpush1.msra.mxu0 0.0
    %1528 = vmatprep.subr.mxu0 0.0
    %1529 = vmatpush1.msra.mxu0 0.0
    %1530 = vmatprep.subr.mxu0 0.0
    %1531 = vmatpush1.msra.mxu0 0.0
    %1532 = vmatprep.subr.mxu0 0.0
    %1533 = vmatpush1.msra.mxu0 0.0
    %1534 = vmatprep.subr.mxu0 0.0
    %1535 = vmatpush1.msra.mxu0 0.0
    %1536 = vmatprep.subr.mxu0 0.0
    %1537 = vmatpush1.msra.mxu0 0.0
    %1538 = vmatprep.subr.mxu0 0.0
    %1539 = vmatpush1.msra.mxu0 0.0
    %1540 = vmatprep.subr.mxu0 0.0
    %1541 = vmatpush1.msra.mxu0 0.0
    %1542 = vmatprep.subr.mxu0 0.0
    %1543 = vmatpush1.msra.mxu0 %v1509
    %1544 = vmatprep.subr.mxu0 0.0
    %1545 = vmatpush1.msra.mxu0 %v1504
    %1546 = vmatprep.subr.mxu0 0.0
    %1547 = vmatpush2.msra.mxu0 0.0
    %1548 = vmatprep.subr.mxu0 0.0
    %1549 = vmatpush2.msra.mxu0 0.0
    %1550 = vmatprep.subr.mxu0 0.0
    %1551 = vmatpush2.msra.mxu0 0.0
    %1552 = vmatprep.subr.mxu0 0.0
    %1553 = vmatpush2.msra.mxu0 0.0
    %1554 = vmatprep.subr.mxu0 0.0
    %1555 = vmatpush2.msra.mxu0 0.0
    %1556 = vmatprep.subr.mxu0 0.0
    %1557 = vmatpush2.msra.mxu0 0.0
    %1558 = vmatprep.subr.mxu0 0.0
    %1559 = vmatpush2.msra.mxu0 0.0
    %1560 = vmatprep.subr.mxu0 0.0
    %1561 = vmatpush2.msra.mxu0 0.0
    %1562 = vmatprep.subr.mxu0 0.0
    %1563 = vmatpush2.msra.mxu0 0.0
    %1564 = vmatprep.subr.mxu0 0.0
    %1565 = vmatpush2.msra.mxu0 0.0
    %1566 = vmatprep.subr.mxu0 0.0
    %1567 = vmatpush2.msra.mxu0 0.0
    %1568 = vmatprep.subr.mxu0 0.0
    %1569 = vmatpush2.msra.mxu0 0.0
    %1570 = vmatprep.subr.mxu0 0.0
    %1571 = vmatpush2.msra.mxu0 0.0
    %1572 = vmatprep.subr.mxu0 0.0
    %1573 = vmatpush2.msra.mxu0 0.0
    %1574 = vmatprep.subr.mxu0 0.0
    %1575 = vmatpush2.msra.mxu0 0.0
    %1576 = vmatprep.subr.mxu0 0.0
    %1577 = vmatpush2.msra.mxu0 0.0
    %1578 = vmatprep.mubr.f32.mxu0 0.0
    %1579 = vmatmul.mubr.f32.gmra.mxu0 %v620
    %v1580 = vpop.f32.mrf.mxu0
    %v1581 = vadd.f32 0.0, %v1580
    %v1582 = vpop.f32.mrf.mxu0
    %1583 = vdwg.mxu0
    %v1584 = vmul.f32 %v1581, 0.0625
    %v1585 = vlaneseq
    %v1586 = vshrl.u32 %v1585, 7
    %v1587 = vsub.s32 0, %v1586
    %v1588 = vrot.slane %v1584, %v1587
    %v1589 = vsub.f32 %v1504, %v1588
    %v1590 = vsub.f32 %v1509, %v1588
    %v1591 = vmul.f32 %v1589, %v1589
    %v1592 = vmul.f32 %v1590, %v1590
    %1593 = vmatprep.subr.mxu0 0.0
    %1594 = vmatpush1.msra.mxu0 0.0
    %1595 = vmatprep.subr.mxu0 0.0
    %1596 = vmatpush1.msra.mxu0 0.0
    %1597 = vmatprep.subr.mxu0 0.0
    %1598 = vmatpush1.msra.mxu0 0.0
    %1599 = vmatprep.subr.mxu0 0.0
    %1600 = vmatpush1.msra.mxu0 0.0
    %1601 = vmatprep.subr.mxu0 0.0
    %1602 = vmatpush1.msra.mxu0 0.0
    %1603 = vmatprep.subr.mxu0 0.0
    %1604 = vmatpush1.msra.mxu0 0.0
    %1605 = vmatprep.subr.mxu0 0.0
    %1606 = vmatpush1.msra.mxu0 0.0
    %1607 = vmatprep.subr.mxu0 0.0
    %1608 = vmatpush1.msra.mxu0 0.0
    %1609 = vmatprep.subr.mxu0 0.0
    %1610 = vmatpush1.msra.mxu0 0.0
    %1611 = vmatprep.subr.mxu0 0.0
    %1612 = vmatpush1.msra.mxu0 0.0
    %1613 = vmatprep.subr.mxu0 0.0
    %1614 = vmatpush1.msra.mxu0 0.0
    %1615 = vmatprep.subr.mxu0 0.0
    %1616 = vmatpush1.msra.mxu0 0.0
    %1617 = vmatprep.subr.mxu0 0.0
    %1618 = vmatpush1.msra.mxu0 0.0
    %1619 = vmatprep.subr.mxu0 0.0
    %1620 = vmatpush1.msra.mxu0 0.0
    %1621 = vmatprep.subr.mxu0 0.0
    %1622 = vmatpush1.msra.mxu0 %v1592
    %1623 = vmatprep.subr.mxu0 0.0
    %1624 = vmatpush1.msra.mxu0 %v1591
    %1625 = vmatprep.subr.mxu0 0.0
    %1626 = vmatpush2.msra.mxu0 0.0
    %1627 = vmatprep.subr.mxu0 0.0
    %1628 = vmatpush2.msra.mxu0 0.0
    %1629 = vmatprep.subr.mxu0 0.0
    %1630 = vmatpush2.msra.mxu0 0.0
    %1631 = vmatprep.subr.mxu0 0.0
    %1632 = vmatpush2.msra.mxu0 0.0
    %1633 = vmatprep.subr.mxu0 0.0
    %1634 = vmatpush2.msra.mxu0 0.0
    %1635 = vmatprep.subr.mxu0 0.0
    %1636 = vmatpush2.msra.mxu0 0.0
    %1637 = vmatprep.subr.mxu0 0.0
    %1638 = vmatpush2.msra.mxu0 0.0
    %1639 = vmatprep.subr.mxu0 0.0
    %1640 = vmatpush2.msra.mxu0 0.0
    %1641 = vmatprep.subr.mxu0 0.0
    %1642 = vmatpush2.msra.mxu0 0.0
    %1643 = vmatprep.subr.mxu0 0.0
    %1644 = vmatpush2.msra.mxu0 0.0
    %1645 = vmatprep.subr.mxu0 0.0
    %1646 = vmatpush2.msra.mxu0 0.0
    %1647 = vmatprep.subr.mxu0 0.0
    %1648 = vmatpush2.msra.mxu0 0.0
    %1649 = vmatprep.subr.mxu0 0.0
    %1650 = vmatpush2.msra.mxu0 0.0
    %1651 = vmatprep.subr.mxu0 0.0
    %1652 = vmatpush2.msra.mxu0 0.0
    %1653 = vmatprep.subr.mxu0 0.0
    %1654 = vmatpush2.msra.mxu0 0.0
    %1655 = vmatprep.subr.mxu0 0.0
    %1656 = vmatpush2.msra.mxu0 0.0
    %1657 = vmatprep.mubr.f32.mxu0 0.0
    %1658 = vmatmul.mubr.f32.gmra.mxu0 %v620
    %v1659 = vpop.f32.mrf.mxu0
    %v1660 = vadd.f32 0.0, %v1659
    %v1661 = vpop.f32.mrf.mxu0
    %1662 = vdwg.mxu0
    %v1663 = vmul.f32 %v1660, 0.0625
    %v1664 = vadd.f32 %v1663, 1e-05
    %v1665 = vrsqrt.pop %v1664
    %v1666 = vlaneseq
    %v1667 = vshrl.u32 %v1666, 7
    %v1668 = vsub.s32 0, %v1667
    %v1669 = vrot.slane %v1665, %v1668
    %v1670 = vmul.f32 %v1589, %v1669
    %v1671 = vmul.f32 %v1590, %v1669
    %v1673 = vlaneseq
    %v1674 = vshrl.u32 %v1673, 7
    %v1675 = vsub.s32 0, %v1674
    %v1676 = vrot.slane %v1512, %v1675
    %v1678 = vmul.f32 %v1670, %v1676
    %v1679 = vmul.f32 %v1671, %v1676
    %v1681 = vlaneseq
    %v1682 = vshrl.u32 %v1681, 7
    %v1683 = vsub.s32 0, %v1682
    %v1684 = vrot.slane %v1513, %v1683
    %v1686 = vadd.f32 %v1678, %v1684
    %v1687 = vadd.f32 %v1679, %v1684
    %1688 = vst [vmem:[#allocation32] sm:$0xff] %v1686
    %1689 = vst [vmem:[#allocation32 + $0x8] sm:$0xff] %v1687
    // Predicated region
    $region142: #{forward.1} parent=1 // pred_check
      _
    $region143: #{forward.1} parent=1 // pred_check_branch
      %1691 = sbr.rel (0) target = $region145
    $region144: #{forward.1} parent=1 // pred_region
      %s1693 = ssub.s32 128, 128
      %1694 = vsyncadd [#allocation4], %s1693
      %s1696 = sshll.u32 [#allocation28], 4
      %s1697 = int_to_ptr.vmem [resolvable:$true] %s1696
      %1699 = dma.vmem_to_hbm [thread:$0]  %s1697, 128, %s19, [#allocation4]
    $region145: #{forward.1} parent=1 // pred_fallthru
      _
    // Predicated region
    $region146: #{forward.1} parent=1 // pred_check
      _
    $region147: #{forward.1} parent=1 // pred_check_branch
      %1701 = sbr.rel (0) target = $region149
    $region148: #{forward.1} parent=1 // pred_region
      %s1703 = ssub.s32 256, 256
      %1704 = vsyncadd [#allocation30], %s1703
      %s1705 = sshll.u32 [#allocation29], 4
      %s1706 = int_to_ptr.vmem [resolvable:$true] %s1705
      %1711 = dma.vmem_to_hbm [thread:$0]  %s1706, 256, %s20, [#allocation30], 128, 128, 8
    $region149: #{forward.1} parent=1 // pred_fallthru
      _
    // Predicated region
    $region150: #{forward.1} parent=1 // pred_check
      _
    $region151: #{forward.1} parent=1 // pred_check_branch
      %1713 = sbr.rel (0) target = $region153
    $region152: #{forward.1} parent=1 // pred_region
      %s1715 = ssub.s32 128, 128
      %1716 = vsyncadd [#allocation30], %s1715
      %s1718 = sshll.u32 [#allocation31], 4
      %s1719 = int_to_ptr.vmem [resolvable:$true] %s1718
      %1721 = dma.vmem_to_hbm [thread:$0]  %s1719, 128, %s21, [#allocation30]
    $region153: #{forward.1} parent=1 // pred_fallthru
      _
    // Predicated region
    $region154: #{forward.1} parent=1 // pred_check
      _
    $region155: #{forward.1} parent=1 // pred_check_branch
      %1723 = sbr.rel (0) target = $region157
    $region156: #{forward.1} parent=1 // pred_region
      %s1725 = ssub.s32 256, 256
      %1726 = vsyncadd [#allocation33], %s1725
      %s1727 = sshll.u32 [#allocation32], 4
      %s1728 = int_to_ptr.vmem [resolvable:$true] %s1727
      %1733 = dma.vmem_to_hbm [thread:$0]  %s1728, 256, %s22, [#allocation33], 128, 128, 8
    $region157: #{forward.1} parent=1 // pred_fallthru
      _
    // Predicated region
    $region158: #{forward.1} parent=1 // pred_check
      _
    $region159: #{forward.1} parent=1 // pred_check_branch
      %1735 = sbr.rel (0) target = $region161
    $region160: #{forward.1} parent=1 // pred_region
      %1736 = dma.done [#allocation4], 128
    $region161: #{forward.1} parent=1 // pred_fallthru
      _
    // Predicated region
    $region162: #{forward.1} parent=1 // pred_check
      _
    $region163: #{forward.1} parent=1 // pred_check_branch
      %1738 = sbr.rel (0) target = $region165
    $region164: #{forward.1} parent=1 // pred_region
      %1739 = dma.done [#allocation30], 256
    $region165: #{forward.1} parent=1 // pred_fallthru
      _
    // Predicated region
    $region166: #{forward.1} parent=1 // pred_check
      _
    $region167: #{forward.1} parent=1 // pred_check_branch
      %1741 = sbr.rel (0) target = $region169
    $region168: #{forward.1} parent=1 // pred_region
      %1742 = dma.done [#allocation30], 128
    $region169: #{forward.1} parent=1 // pred_fallthru
      _
    // Predicated region
    $region170: #{forward.1} parent=1 // pred_check
      _
    $region171: #{forward.1} parent=1 // pred_check_branch
      %1744 = sbr.rel (0) target = $region173
    $region172: #{forward.1} parent=1 // pred_region
      %1745 = dma.done [#allocation33], 256
    $region173: #{forward.1} parent=1 // pred_fallthru
      _
    %1746 = vsyncpa [#allocation3], 1
    %1747 = vsyncpa [#allocation6], 1
    %1748 = vsyncpa [#allocation9], 1
    %1749 = vsyncpa [#allocation12], 1
    %1750 = vsyncpa [#allocation15], 1
    %1751 = vsyncpa [#allocation18], 1
    %1752 = vsyncpa [#allocation21], 1
    %1753 = vsyncpa [#allocation24], 1
    %1754 = vsyncpa [#allocation27], 1
    %1755 = vsyncpa [#allocation4], 1
    %1756 = vsyncpa [#allocation30], 1
    %1757 = vsyncpa [#allocation33], 1

</llo_original>
